<compile_context>
chip_gen: v5e
topology: v5e:2x2
jax: 0.10.0
libtpu: 0.0.40
codegen_flags: <defaults>
</compile_context>

<pallas_src>
import functools

import numpy as np
import jax
import jax.numpy as jnp
from jax.experimental import pallas as pl
from jax.experimental.pallas import tpu as pltpu


# ------------------------------ fused kernel -------------------------------- #

def _lenet_fused_kernel(x_ref, m1_ref, b1_ref, rp1_ref, cp1_ref,
                        m2_ref, b2_ref, rp2_ref, cp2_ref,
                        fw1_ref, fb1_ref, fw2_ref, fb2_ref, fw3_ref, fb3_ref,
                        out_ref):
    dot = functools.partial(jnp.dot, preferred_element_type=jnp.float32)

    x = x_ref[0]                                            # (32, 32), C_in = 1

    # conv1 + bias + ReLU  ->  h1[oh, ow*6 + oc], shape (28, 168)
    acc = dot(x[0:28, :], m1_ref[0])
    for ki in range(1, 5):
        acc = acc + dot(x[ki:ki + 28, :], m1_ref[ki])
    h1 = jnp.maximum(acc + b1_ref[...], 0.0)

    # 2x2 max pool (exact 0/1-gather matmuls)  ->  p1[h, w*6 + c], shape (14, 84)
    r = jnp.maximum(dot(rp1_ref[0], h1), dot(rp1_ref[1], h1))      # (14, 168)
    p1 = jnp.maximum(dot(r, cp1_ref[0]), dot(r, cp1_ref[1]))       # (14, 84)

    # conv2 + bias + ReLU  ->  h2[oh, ow*16 + oc], shape (10, 160)
    acc = dot(p1[0:10, :], m2_ref[0])
    for ki in range(1, 5):
        acc = acc + dot(p1[ki:ki + 10, :], m2_ref[ki])
    h2 = jnp.maximum(acc + b2_ref[...], 0.0)

    # 2x2 max pool  ->  p2[h, w*16 + c], shape (5, 80)
    r = jnp.maximum(dot(rp2_ref[0], h2), dot(rp2_ref[1], h2))      # (5, 160)
    p2 = jnp.maximum(dot(r, cp2_ref[0]), dot(r, cp2_ref[1]))       # (5, 80)

    # fc1 + ReLU: contract over (h, w*16+c); fw1 is (5, 80, 128) (lanes padded)
    acc = dot(p2[0:1, :], fw1_ref[0])
    for h in range(1, 5):
        acc = acc + dot(p2[h:h + 1, :], fw1_ref[h])
    f1 = jnp.maximum(acc + fb1_ref[...], 0.0)                      # (1, 128)

    f2 = jnp.maximum(dot(f1, fw2_ref[...]) + fb2_ref[...], 0.0)    # (1, 128)
    f3 = dot(f2, fw3_ref[...]) + fb3_ref[...]                      # (1, 128)

    out_ref[0] = f3.astype(out_ref.dtype)                          # lane-dense store


# --------------------------- parameter preparation --------------------------- #

def prepare_inputs(params):
    """Fold conv weights into band matrices, build pool-gather matrices, pad FC
    weights to 128 lanes.  Done once per parameter set (plain JAX / numpy)."""
    f32 = jnp.float32
    w1 = params["conv1_w"]          # (6, 1, 5, 5)   [o, c, ki, kj]
    w2 = params["conv2_w"]          # (16, 6, 5, 5)

    # width-shift 0/1 selections: sel[kj, w, ow] = 1 iff w == ow + kj
    sel1 = np.zeros((5, 32, 28), np.float32)
    sel2 = np.zeros((5, 14, 10), np.float32)
    for kj in range(5):
        for ow in range(28):
            sel1[kj, ow + kj, ow] = 1.0
        for ow in range(10):
            sel2[kj, ow + kj, ow] = 1.0

    # M1[ki, w, ow*6+o]      = sum_kj [w==ow+kj] * w1[o,0,ki,kj]
    m1 = jnp.einsum("jwv,oij->iwvo", jnp.asarray(sel1), w1[:, 0, :, :]).reshape(5, 32, 28 * 6)
    # M2[ki, w*6+c, ow*16+o] = sum_kj [w==ow+kj] * w2[o,c,ki,kj]
    m2 = jnp.einsum("jwv,ocij->iwcvo", jnp.asarray(sel2), w2).reshape(5, 14 * 6, 10 * 16)

    b1 = jnp.tile(params["conv1_b"], 28)[None, :]                  # (1, 168)
    b2 = jnp.tile(params["conv2_b"], 10)[None, :]                  # (1, 160)

    # max-pool gather matrices (each row/col selects exactly one element)
    rp1 = np.zeros((2, 14, 28), np.float32)
    rp2 = np.zeros((2, 5, 10), np.float32)
    cw1 = np.zeros((2, 28, 14), np.float32)
    cw2 = np.zeros((2, 10, 5), np.float32)
    for d in range(2):
        for p in range(14):
            rp1[d, p, 2 * p + d] = 1.0
            cw1[d, 2 * p + d, p] = 1.0
        for p in range(5):
            rp2[d, p, 2 * p + d] = 1.0
            cw2[d, 2 * p + d, p] = 1.0
    cp1 = np.stack([np.kron(cw1[d], np.eye(6, dtype=np.float32)) for d in range(2)])   # (2,168,84)
    cp2 = np.stack([np.kron(cw2[d], np.eye(16, dtype=np.float32)) for d in range(2)])  # (2,160,80)

    # fc1: reorder rows from (C,H,W) flatten order to the kernel's (H, W, C) order,
    # pad lanes to 128, split by H so the kernel only needs static slices.
    fw1 = params["fc1_w"].reshape(16, 5, 5, 120).transpose(1, 2, 0, 3).reshape(400, 120)
    fw1 = jnp.pad(fw1, ((0, 0), (0, 8))).reshape(5, 80, 128)
    fb1 = jnp.pad(params["fc1_b"], (0, 8))[None, :]                # (1, 128)
    fw2 = jnp.pad(params["fc2_w"], ((0, 8), (0, 44)))              # (128, 128)
    fb2 = jnp.pad(params["fc2_b"], (0, 44))[None, :]
    fw3 = jnp.pad(params["fc3_w"], ((0, 44), (0, 118)))            # (128, 128)
    fb3 = jnp.pad(params["fc3_b"], (0, 118))[None, :]

    return {
        "m1": m1.astype(f32), "b1": b1.astype(f32),
        "rp1": jnp.asarray(rp1), "cp1": jnp.asarray(cp1),
        "m2": m2.astype(f32), "b2": b2.astype(f32),
        "rp2": jnp.asarray(rp2), "cp2": jnp.asarray(cp2),
        "fw1": fw1.astype(f32), "fb1": fb1.astype(f32),
        "fw2": fw2.astype(f32), "fb2": fb2.astype(f32),
        "fw3": fw3.astype(f32), "fb3": fb3.astype(f32),
    }


# ------------------------------- forward pass -------------------------------- #

def net_forward(prep, x):
    n = x.shape[0]
    x2 = x[:, 0, :, :].astype(jnp.float32)          # (N, 32, 32); conv1 C_in = 1

    def _const(shape):                               # whole-array VMEM-resident block
        zeros = (0,) * len(shape)
        return pl.BlockSpec(shape, lambda b, _z=zeros: _z)

    in_specs = [
        pl.BlockSpec((1, 32, 32), lambda b: (b, 0, 0)),            # per-sample input
        _const(prep["m1"].shape), _const(prep["b1"].shape),
        _const(prep["rp1"].shape), _const(prep["cp1"].shape),
        _const(prep["m2"].shape), _const(prep["b2"].shape),
        _const(prep["rp2"].shape), _const(prep["cp2"].shape),
        _const(prep["fw1"].shape), _const(prep["fb1"].shape),
        _const(prep["fw2"].shape), _const(prep["fb2"].shape),
        _const(prep["fw3"].shape), _const(prep["fb3"].shape),
    ]

    out = pl.pallas_call(
        _lenet_fused_kernel,
        out_shape=jax.ShapeDtypeStruct((n, 1, 128), jnp.float32),
        grid=(n,),
        in_specs=in_specs,
        out_specs=pl.BlockSpec((1, 1, 128), lambda b: (b, 0, 0)),
        compiler_params=pltpu.CompilerParams(
            dimension_semantics=("parallel",)),      # v7x: 2 TCs split the batch
    )(x2, prep["m1"], prep["b1"], prep["rp1"], prep["cp1"],
      prep["m2"], prep["b2"], prep["rp2"], prep["cp2"],
      prep["fw1"], prep["fb1"], prep["fw2"], prep["fb2"],
      prep["fw3"], prep["fb3"])

    return out[:, 0, :10]


# --------------------------------- reference --------------------------------- #

def init_params(key):
    """Deterministic init, PyTorch-style U(-1/sqrt(fan_in), 1/sqrt(fan_in))."""
    def uni(k, shape, fan_in):
        bound = 1.0 / float(fan_in) ** 0.5
        return jax.random.uniform(k, shape, jnp.float32, -bound, bound)

    ks = jax.random.split(key, 10)
    return {
        "conv1_w": uni(ks[0], (6, 1, 5, 5), 1 * 5 * 5),
        "conv1_b": uni(ks[1], (6,), 1 * 5 * 5),
        "conv2_w": uni(ks[2], (16, 6, 5, 5), 6 * 5 * 5),
        "conv2_b": uni(ks[3], (16,), 6 * 5 * 5),
        "fc1_w": uni(ks[4], (16 * 5 * 5, 120), 16 * 5 * 5),   # stored (in, out)
        "fc1_b": uni(ks[5], (120,), 16 * 5 * 5),
        "fc2_w": uni(ks[6], (120, 84), 120),
        "fc2_b": uni(ks[7], (84,), 120),
        "fc3_w": uni(ks[8], (84, 10), 84),
        "fc3_b": uni(ks[9], (10,), 84),
    }


def net_reference(params, x):
    """Pure-JAX reference (matches the PyTorch module semantics)."""
    def conv(x, w, b):
        y = jax.lax.conv_general_dilated(
            x, w, (1, 1), "VALID", dimension_numbers=("NCHW", "OIHW", "NCHW"))
        return jax.nn.relu(y + b[None, :, None, None])

    def pool(x):
        return jax.lax.reduce_window(
            x, -jnp.inf, jax.lax.max, (1, 1, 2, 2), (1, 1, 2, 2), "VALID")

    x = pool(conv(x, params["conv1_w"], params["conv1_b"]))
    x = pool(conv(x, params["conv2_w"], params["conv2_b"]))
    x = x.reshape(x.shape[0], -1)
    x = jax.nn.relu(x @ params["fc1_w"] + params["fc1_b"])
    x = jax.nn.relu(x @ params["fc2_w"] + params["fc2_b"])
    return x @ params["fc3_w"] + params["fc3_b"]


if __name__ == "__main__":
    key = jax.random.PRNGKey(0)
    k_params, k_x = jax.random.split(key)
    params = init_params(k_params)
    # LeNet input: batch=2, 1 channel, 32x32 (flattened features = 16*5*5 = 400)
    x = jax.random.normal(k_x, (2, 1, 32, 32), dtype=jnp.float32)

    prep = prepare_inputs(params)            # one-time parameter folding / padding
    fwd = jax.jit(net_forward)

    out = jax.block_until_ready(fwd(prep, x))
    ref = jax.block_until_ready(net_reference(params, x))

    assert out.shape == (2, 10), out.shape
    assert jnp.allclose(out, ref, rtol=1e-3, atol=1e-3), float(jnp.max(jnp.abs(out - ref)))
    print("KERNEL_OK")
</pallas_src>

<mosaic_0001>
module attributes {stable_mosaic.version = 11 : i64} {
  func.func @_lenet_fused_kernel(%arg0: i32, %arg1: memref<1x32x32xf32, #tpu.memory_space<vmem>>, %arg2: memref<5x32x168xf32, #tpu.memory_space<vmem>>, %arg3: memref<1x168xf32, #tpu.memory_space<vmem>>, %arg4: memref<2x14x28xf32, #tpu.memory_space<vmem>>, %arg5: memref<2x168x84xf32, #tpu.memory_space<vmem>>, %arg6: memref<5x84x160xf32, #tpu.memory_space<vmem>>, %arg7: memref<1x160xf32, #tpu.memory_space<vmem>>, %arg8: memref<2x5x10xf32, #tpu.memory_space<vmem>>, %arg9: memref<2x160x80xf32, #tpu.memory_space<vmem>>, %arg10: memref<5x80x128xf32, #tpu.memory_space<vmem>>, %arg11: memref<1x128xf32, #tpu.memory_space<vmem>>, %arg12: memref<128x128xf32, #tpu.memory_space<vmem>>, %arg13: memref<1x128xf32, #tpu.memory_space<vmem>>, %arg14: memref<128x128xf32, #tpu.memory_space<vmem>>, %arg15: memref<1x128xf32, #tpu.memory_space<vmem>>, %arg16: memref<1x1x128xf32, #tpu.memory_space<vmem>>) attributes {dimension_semantics = [#tpu.dimension_semantics<parallel>], iteration_bounds = array<i64: 2>, scalar_prefetch = 0 : i64, scratch_operands = 0 : i64, tpu.core_type = #tpu.core_type<tc>, window_params = [{transform_indices = @transform_0, window_bounds = array<i64: 1, 32, 32>}, {pipeline_mode = #tpu.pipeline_mode<synchronous>, transform_indices = @transform_1, window_bounds = array<i64: 5, 32, 168>}, {pipeline_mode = #tpu.pipeline_mode<synchronous>, transform_indices = @transform_2, window_bounds = array<i64: 1, 168>}, {pipeline_mode = #tpu.pipeline_mode<synchronous>, transform_indices = @transform_3, window_bounds = array<i64: 2, 14, 28>}, {pipeline_mode = #tpu.pipeline_mode<synchronous>, transform_indices = @transform_4, window_bounds = array<i64: 2, 168, 84>}, {pipeline_mode = #tpu.pipeline_mode<synchronous>, transform_indices = @transform_5, window_bounds = array<i64: 5, 84, 160>}, {pipeline_mode = #tpu.pipeline_mode<synchronous>, transform_indices = @transform_6, window_bounds = array<i64: 1, 160>}, {pipeline_mode = #tpu.pipeline_mode<synchronous>, transform_indices = @transform_7, window_bounds = array<i64: 2, 5, 10>}, {pipeline_mode = #tpu.pipeline_mode<synchronous>, transform_indices = @transform_8, window_bounds = array<i64: 2, 160, 80>}, {pipeline_mode = #tpu.pipeline_mode<synchronous>, transform_indices = @transform_9, window_bounds = array<i64: 5, 80, 128>}, {pipeline_mode = #tpu.pipeline_mode<synchronous>, transform_indices = @transform_10, window_bounds = array<i64: 1, 128>}, {pipeline_mode = #tpu.pipeline_mode<synchronous>, transform_indices = @transform_11, window_bounds = array<i64: 128, 128>}, {pipeline_mode = #tpu.pipeline_mode<synchronous>, transform_indices = @transform_12, window_bounds = array<i64: 1, 128>}, {pipeline_mode = #tpu.pipeline_mode<synchronous>, transform_indices = @transform_13, window_bounds = array<i64: 128, 128>}, {pipeline_mode = #tpu.pipeline_mode<synchronous>, transform_indices = @transform_14, window_bounds = array<i64: 1, 128>}, {transform_indices = @transform_15, window_bounds = array<i64: 1, 1, 128>}]} {
    %c0 = arith.constant 0 : index
    %c0_0 = arith.constant 0 : index
    %c0_1 = arith.constant 0 : index
    %0 = vector.load %arg1[%c0, %c0_0, %c0_1] : memref<1x32x32xf32, #tpu.memory_space<vmem>>, vector<1x32x32xf32>
    %1 = vector.shape_cast %0 : vector<1x32x32xf32> to vector<32x32xf32>
    %2 = vector.extract_strided_slice %1 {offsets = [0, 0], sizes = [28, 32], strides = [1, 1]} : vector<32x32xf32> to vector<28x32xf32>
    %c0_2 = arith.constant 0 : index
    %c0_3 = arith.constant 0 : index
    %c0_4 = arith.constant 0 : index
    %3 = vector.load %arg2[%c0_2, %c0_3, %c0_4] : memref<5x32x168xf32, #tpu.memory_space<vmem>>, vector<1x32x168xf32>
    %4 = vector.shape_cast %3 : vector<1x32x168xf32> to vector<32x168xf32>
    %cst = arith.constant dense<0.000000e+00> : vector<28x168xf32>
    %5 = tpu.matmul %2, %4, %cst {dimension_numbers = #tpu.dot_dimension_numbers<[1], [0], [0], [1], [0, 0, 1, 1], [], []>} : vector<28x32xf32>, vector<32x168xf32>, vector<28x168xf32> -> vector<28x168xf32>
    %6 = vector.extract_strided_slice %1 {offsets = [1, 0], sizes = [28, 32], strides = [1, 1]} : vector<32x32xf32> to vector<28x32xf32>
    %c1 = arith.constant 1 : index
    %c0_5 = arith.constant 0 : index
    %c0_6 = arith.constant 0 : index
    %7 = vector.load %arg2[%c1, %c0_5, %c0_6] : memref<5x32x168xf32, #tpu.memory_space<vmem>>, vector<1x32x168xf32>
    %8 = vector.shape_cast %7 : vector<1x32x168xf32> to vector<32x168xf32>
    %cst_7 = arith.constant dense<0.000000e+00> : vector<28x168xf32>
    %9 = tpu.matmul %6, %8, %cst_7 {dimension_numbers = #tpu.dot_dimension_numbers<[1], [0], [0], [1], [0, 0, 1, 1], [], []>} : vector<28x32xf32>, vector<32x168xf32>, vector<28x168xf32> -> vector<28x168xf32>
    %10 = arith.addf %5, %9 : vector<28x168xf32>
    %11 = vector.extract_strided_slice %1 {offsets = [2, 0], sizes = [28, 32], strides = [1, 1]} : vector<32x32xf32> to vector<28x32xf32>
    %c2 = arith.constant 2 : index
    %c0_8 = arith.constant 0 : index
    %c0_9 = arith.constant 0 : index
    %12 = vector.load %arg2[%c2, %c0_8, %c0_9] : memref<5x32x168xf32, #tpu.memory_space<vmem>>, vector<1x32x168xf32>
    %13 = vector.shape_cast %12 : vector<1x32x168xf32> to vector<32x168xf32>
    %cst_10 = arith.constant dense<0.000000e+00> : vector<28x168xf32>
    %14 = tpu.matmul %11, %13, %cst_10 {dimension_numbers = #tpu.dot_dimension_numbers<[1], [0], [0], [1], [0, 0, 1, 1], [], []>} : vector<28x32xf32>, vector<32x168xf32>, vector<28x168xf32> -> vector<28x168xf32>
    %15 = arith.addf %10, %14 : vector<28x168xf32>
    %16 = vector.extract_strided_slice %1 {offsets = [3, 0], sizes = [28, 32], strides = [1, 1]} : vector<32x32xf32> to vector<28x32xf32>
    %c3 = arith.constant 3 : index
    %c0_11 = arith.constant 0 : index
    %c0_12 = arith.constant 0 : index
    %17 = vector.load %arg2[%c3, %c0_11, %c0_12] : memref<5x32x168xf32, #tpu.memory_space<vmem>>, vector<1x32x168xf32>
    %18 = vector.shape_cast %17 : vector<1x32x168xf32> to vector<32x168xf32>
    %cst_13 = arith.constant dense<0.000000e+00> : vector<28x168xf32>
    %19 = tpu.matmul %16, %18, %cst_13 {dimension_numbers = #tpu.dot_dimension_numbers<[1], [0], [0], [1], [0, 0, 1, 1], [], []>} : vector<28x32xf32>, vector<32x168xf32>, vector<28x168xf32> -> vector<28x168xf32>
    %20 = arith.addf %15, %19 : vector<28x168xf32>
    %21 = vector.extract_strided_slice %1 {offsets = [4, 0], sizes = [28, 32], strides = [1, 1]} : vector<32x32xf32> to vector<28x32xf32>
    %c4 = arith.constant 4 : index
    %c0_14 = arith.constant 0 : index
    %c0_15 = arith.constant 0 : index
    %22 = vector.load %arg2[%c4, %c0_14, %c0_15] : memref<5x32x168xf32, #tpu.memory_space<vmem>>, vector<1x32x168xf32>
    %23 = vector.shape_cast %22 : vector<1x32x168xf32> to vector<32x168xf32>
    %cst_16 = arith.constant dense<0.000000e+00> : vector<28x168xf32>
    %24 = tpu.matmul %21, %23, %cst_16 {dimension_numbers = #tpu.dot_dimension_numbers<[1], [0], [0], [1], [0, 0, 1, 1], [], []>} : vector<28x32xf32>, vector<32x168xf32>, vector<28x168xf32> -> vector<28x168xf32>
    %25 = arith.addf %20, %24 : vector<28x168xf32>
    %c0_17 = arith.constant 0 : index
    %c0_18 = arith.constant 0 : index
    %26 = vector.load %arg3[%c0_17, %c0_18] : memref<1x168xf32, #tpu.memory_space<vmem>>, vector<1x168xf32>
    %27 = vector.broadcast %26 : vector<1x168xf32> to vector<28x168xf32>
    %28 = arith.addf %25, %27 : vector<28x168xf32>
    %cst_19 = arith.constant 0.000000e+00 : f32
    %29 = vector.broadcast %cst_19 : f32 to vector<28x168xf32>
    %30 = arith.maximumf %28, %29 : vector<28x168xf32>
    %c0_20 = arith.constant 0 : index
    %c0_21 = arith.constant 0 : index
    %c0_22 = arith.constant 0 : index
    %31 = vector.load %arg4[%c0_20, %c0_21, %c0_22] : memref<2x14x28xf32, #tpu.memory_space<vmem>>, vector<1x14x28xf32>
    %32 = vector.shape_cast %31 : vector<1x14x28xf32> to vector<14x28xf32>
    %cst_23 = arith.constant dense<0.000000e+00> : vector<14x168xf32>
    %33 = tpu.matmul %32, %30, %cst_23 {dimension_numbers = #tpu.dot_dimension_numbers<[1], [0], [0], [1], [0, 0, 1, 1], [], []>} : vector<14x28xf32>, vector<28x168xf32>, vector<14x168xf32> -> vector<14x168xf32>
    %c1_24 = arith.constant 1 : index
    %c0_25 = arith.constant 0 : index
    %c0_26 = arith.constant 0 : index
    %34 = vector.load %arg4[%c1_24, %c0_25, %c0_26] : memref<2x14x28xf32, #tpu.memory_space<vmem>>, vector<1x14x28xf32>
    %35 = vector.shape_cast %34 : vector<1x14x28xf32> to vector<14x28xf32>
    %cst_27 = arith.constant dense<0.000000e+00> : vector<14x168xf32>
    %36 = tpu.matmul %35, %30, %cst_27 {dimension_numbers = #tpu.dot_dimension_numbers<[1], [0], [0], [1], [0, 0, 1, 1], [], []>} : vector<14x28xf32>, vector<28x168xf32>, vector<14x168xf32> -> vector<14x168xf32>
    %37 = arith.maximumf %33, %36 : vector<14x168xf32>
    %c0_28 = arith.constant 0 : index
    %c0_29 = arith.constant 0 : index
    %c0_30 = arith.constant 0 : index
    %38 = vector.load %arg5[%c0_28, %c0_29, %c0_30] : memref<2x168x84xf32, #tpu.memory_space<vmem>>, vector<1x168x84xf32>
    %39 = vector.shape_cast %38 : vector<1x168x84xf32> to vector<168x84xf32>
    %cst_31 = arith.constant dense<0.000000e+00> : vector<14x84xf32>
    %40 = tpu.matmul %37, %39, %cst_31 {dimension_numbers = #tpu.dot_dimension_numbers<[1], [0], [0], [1], [0, 0, 1, 1], [], []>} : vector<14x168xf32>, vector<168x84xf32>, vector<14x84xf32> -> vector<14x84xf32>
    %c1_32 = arith.constant 1 : index
    %c0_33 = arith.constant 0 : index
    %c0_34 = arith.constant 0 : index
    %41 = vector.load %arg5[%c1_32, %c0_33, %c0_34] : memref<2x168x84xf32, #tpu.memory_space<vmem>>, vector<1x168x84xf32>
    %42 = vector.shape_cast %41 : vector<1x168x84xf32> to vector<168x84xf32>
    %cst_35 = arith.constant dense<0.000000e+00> : vector<14x84xf32>
    %43 = tpu.matmul %37, %42, %cst_35 {dimension_numbers = #tpu.dot_dimension_numbers<[1], [0], [0], [1], [0, 0, 1, 1], [], []>} : vector<14x168xf32>, vector<168x84xf32>, vector<14x84xf32> -> vector<14x84xf32>
    %44 = arith.maximumf %40, %43 : vector<14x84xf32>
    %45 = vector.extract_strided_slice %44 {offsets = [0, 0], sizes = [10, 84], strides = [1, 1]} : vector<14x84xf32> to vector<10x84xf32>
    %c0_36 = arith.constant 0 : index
    %c0_37 = arith.constant 0 : index
    %c0_38 = arith.constant 0 : index
    %46 = vector.load %arg6[%c0_36, %c0_37, %c0_38] : memref<5x84x160xf32, #tpu.memory_space<vmem>>, vector<1x84x160xf32>
    %47 = vector.shape_cast %46 : vector<1x84x160xf32> to vector<84x160xf32>
    %cst_39 = arith.constant dense<0.000000e+00> : vector<10x160xf32>
    %48 = tpu.matmul %45, %47, %cst_39 {dimension_numbers = #tpu.dot_dimension_numbers<[1], [0], [0], [1], [0, 0, 1, 1], [], []>} : vector<10x84xf32>, vector<84x160xf32>, vector<10x160xf32> -> vector<10x160xf32>
    %49 = vector.extract_strided_slice %44 {offsets = [1, 0], sizes = [10, 84], strides = [1, 1]} : vector<14x84xf32> to vector<10x84xf32>
    %c1_40 = arith.constant 1 : index
    %c0_41 = arith.constant 0 : index
    %c0_42 = arith.constant 0 : index
    %50 = vector.load %arg6[%c1_40, %c0_41, %c0_42] : memref<5x84x160xf32, #tpu.memory_space<vmem>>, vector<1x84x160xf32>
    %51 = vector.shape_cast %50 : vector<1x84x160xf32> to vector<84x160xf32>
    %cst_43 = arith.constant dense<0.000000e+00> : vector<10x160xf32>
    %52 = tpu.matmul %49, %51, %cst_43 {dimension_numbers = #tpu.dot_dimension_numbers<[1], [0], [0], [1], [0, 0, 1, 1], [], []>} : vector<10x84xf32>, vector<84x160xf32>, vector<10x160xf32> -> vector<10x160xf32>
    %53 = arith.addf %48, %52 : vector<10x160xf32>
    %54 = vector.extract_strided_slice %44 {offsets = [2, 0], sizes = [10, 84], strides = [1, 1]} : vector<14x84xf32> to vector<10x84xf32>
    %c2_44 = arith.constant 2 : index
    %c0_45 = arith.constant 0 : index
    %c0_46 = arith.constant 0 : index
    %55 = vector.load %arg6[%c2_44, %c0_45, %c0_46] : memref<5x84x160xf32, #tpu.memory_space<vmem>>, vector<1x84x160xf32>
    %56 = vector.shape_cast %55 : vector<1x84x160xf32> to vector<84x160xf32>
    %cst_47 = arith.constant dense<0.000000e+00> : vector<10x160xf32>
    %57 = tpu.matmul %54, %56, %cst_47 {dimension_numbers = #tpu.dot_dimension_numbers<[1], [0], [0], [1], [0, 0, 1, 1], [], []>} : vector<10x84xf32>, vector<84x160xf32>, vector<10x160xf32> -> vector<10x160xf32>
    %58 = arith.addf %53, %57 : vector<10x160xf32>
    %59 = vector.extract_strided_slice %44 {offsets = [3, 0], sizes = [10, 84], strides = [1, 1]} : vector<14x84xf32> to vector<10x84xf32>
    %c3_48 = arith.constant 3 : index
    %c0_49 = arith.constant 0 : index
    %c0_50 = arith.constant 0 : index
    %60 = vector.load %arg6[%c3_48, %c0_49, %c0_50] : memref<5x84x160xf32, #tpu.memory_space<vmem>>, vector<1x84x160xf32>
    %61 = vector.shape_cast %60 : vector<1x84x160xf32> to vector<84x160xf32>
    %cst_51 = arith.constant dense<0.000000e+00> : vector<10x160xf32>
    %62 = tpu.matmul %59, %61, %cst_51 {dimension_numbers = #tpu.dot_dimension_numbers<[1], [0], [0], [1], [0, 0, 1, 1], [], []>} : vector<10x84xf32>, vector<84x160xf32>, vector<10x160xf32> -> vector<10x160xf32>
    %63 = arith.addf %58, %62 : vector<10x160xf32>
    %64 = vector.extract_strided_slice %44 {offsets = [4, 0], sizes = [10, 84], strides = [1, 1]} : vector<14x84xf32> to vector<10x84xf32>
    %c4_52 = arith.constant 4 : index
    %c0_53 = arith.constant 0 : index
    %c0_54 = arith.constant 0 : index
    %65 = vector.load %arg6[%c4_52, %c0_53, %c0_54] : memref<5x84x160xf32, #tpu.memory_space<vmem>>, vector<1x84x160xf32>
    %66 = vector.shape_cast %65 : vector<1x84x160xf32> to vector<84x160xf32>
    %cst_55 = arith.constant dense<0.000000e+00> : vector<10x160xf32>
    %67 = tpu.matmul %64, %66, %cst_55 {dimension_numbers = #tpu.dot_dimension_numbers<[1], [0], [0], [1], [0, 0, 1, 1], [], []>} : vector<10x84xf32>, vector<84x160xf32>, vector<10x160xf32> -> vector<10x160xf32>
    %68 = arith.addf %63, %67 : vector<10x160xf32>
    %c0_56 = arith.constant 0 : index
    %c0_57 = arith.constant 0 : index
    %69 = vector.load %arg7[%c0_56, %c0_57] : memref<1x160xf32, #tpu.memory_space<vmem>>, vector<1x160xf32>
    %70 = vector.broadcast %69 : vector<1x160xf32> to vector<10x160xf32>
    %71 = arith.addf %68, %70 : vector<10x160xf32>
    %cst_58 = arith.constant 0.000000e+00 : f32
    %72 = vector.broadcast %cst_58 : f32 to vector<10x160xf32>
    %73 = arith.maximumf %71, %72 : vector<10x160xf32>
    %c0_59 = arith.constant 0 : index
    %c0_60 = arith.constant 0 : index
    %c0_61 = arith.constant 0 : index
    %74 = vector.load %arg8[%c0_59, %c0_60, %c0_61] : memref<2x5x10xf32, #tpu.memory_space<vmem>>, vector<1x5x10xf32>
    %75 = vector.shape_cast %74 : vector<1x5x10xf32> to vector<5x10xf32>
    %cst_62 = arith.constant dense<0.000000e+00> : vector<5x160xf32>
    %76 = tpu.matmul %75, %73, %cst_62 {dimension_numbers = #tpu.dot_dimension_numbers<[1], [0], [0], [1], [0, 0, 1, 1], [], []>} : vector<5x10xf32>, vector<10x160xf32>, vector<5x160xf32> -> vector<5x160xf32>
    %c1_63 = arith.constant 1 : index
    %c0_64 = arith.constant 0 : index
    %c0_65 = arith.constant 0 : index
    %77 = vector.load %arg8[%c1_63, %c0_64, %c0_65] : memref<2x5x10xf32, #tpu.memory_space<vmem>>, vector<1x5x10xf32>
    %78 = vector.shape_cast %77 : vector<1x5x10xf32> to vector<5x10xf32>
    %cst_66 = arith.constant dense<0.000000e+00> : vector<5x160xf32>
    %79 = tpu.matmul %78, %73, %cst_66 {dimension_numbers = #tpu.dot_dimension_numbers<[1], [0], [0], [1], [0, 0, 1, 1], [], []>} : vector<5x10xf32>, vector<10x160xf32>, vector<5x160xf32> -> vector<5x160xf32>
    %80 = arith.maximumf %76, %79 : vector<5x160xf32>
    %c0_67 = arith.constant 0 : index
    %c0_68 = arith.constant 0 : index
    %c0_69 = arith.constant 0 : index
    %81 = vector.load %arg9[%c0_67, %c0_68, %c0_69] : memref<2x160x80xf32, #tpu.memory_space<vmem>>, vector<1x160x80xf32>
    %82 = vector.shape_cast %81 : vector<1x160x80xf32> to vector<160x80xf32>
    %cst_70 = arith.constant dense<0.000000e+00> : vector<5x80xf32>
    %83 = tpu.matmul %80, %82, %cst_70 {dimension_numbers = #tpu.dot_dimension_numbers<[1], [0], [0], [1], [0, 0, 1, 1], [], []>} : vector<5x160xf32>, vector<160x80xf32>, vector<5x80xf32> -> vector<5x80xf32>
    %c1_71 = arith.constant 1 : index
    %c0_72 = arith.constant 0 : index
    %c0_73 = arith.constant 0 : index
    %84 = vector.load %arg9[%c1_71, %c0_72, %c0_73] : memref<2x160x80xf32, #tpu.memory_space<vmem>>, vector<1x160x80xf32>
    %85 = vector.shape_cast %84 : vector<1x160x80xf32> to vector<160x80xf32>
    %cst_74 = arith.constant dense<0.000000e+00> : vector<5x80xf32>
    %86 = tpu.matmul %80, %85, %cst_74 {dimension_numbers = #tpu.dot_dimension_numbers<[1], [0], [0], [1], [0, 0, 1, 1], [], []>} : vector<5x160xf32>, vector<160x80xf32>, vector<5x80xf32> -> vector<5x80xf32>
    %87 = arith.maximumf %83, %86 : vector<5x80xf32>
    %88 = vector.extract_strided_slice %87 {offsets = [0, 0], sizes = [1, 80], strides = [1, 1]} : vector<5x80xf32> to vector<1x80xf32>
    %c0_75 = arith.constant 0 : index
    %c0_76 = arith.constant 0 : index
    %c0_77 = arith.constant 0 : index
    %89 = vector.load %arg10[%c0_75, %c0_76, %c0_77] : memref<5x80x128xf32, #tpu.memory_space<vmem>>, vector<1x80x128xf32>
    %90 = vector.shape_cast %89 : vector<1x80x128xf32> to vector<80x128xf32>
    %cst_78 = arith.constant dense<0.000000e+00> : vector<1x128xf32>
    %91 = tpu.matmul %88, %90, %cst_78 {dimension_numbers = #tpu.dot_dimension_numbers<[1], [0], [0], [1], [0, 0, 1, 1], [], []>} : vector<1x80xf32>, vector<80x128xf32>, vector<1x128xf32> -> vector<1x128xf32>
    %92 = vector.extract_strided_slice %87 {offsets = [1, 0], sizes = [1, 80], strides = [1, 1]} : vector<5x80xf32> to vector<1x80xf32>
    %c1_79 = arith.constant 1 : index
    %c0_80 = arith.constant 0 : index
    %c0_81 = arith.constant 0 : index
    %93 = vector.load %arg10[%c1_79, %c0_80, %c0_81] : memref<5x80x128xf32, #tpu.memory_space<vmem>>, vector<1x80x128xf32>
    %94 = vector.shape_cast %93 : vector<1x80x128xf32> to vector<80x128xf32>
    %cst_82 = arith.constant dense<0.000000e+00> : vector<1x128xf32>
    %95 = tpu.matmul %92, %94, %cst_82 {dimension_numbers = #tpu.dot_dimension_numbers<[1], [0], [0], [1], [0, 0, 1, 1], [], []>} : vector<1x80xf32>, vector<80x128xf32>, vector<1x128xf32> -> vector<1x128xf32>
    %96 = arith.addf %91, %95 : vector<1x128xf32>
    %97 = vector.extract_strided_slice %87 {offsets = [2, 0], sizes = [1, 80], strides = [1, 1]} : vector<5x80xf32> to vector<1x80xf32>
    %c2_83 = arith.constant 2 : index
    %c0_84 = arith.constant 0 : index
    %c0_85 = arith.constant 0 : index
    %98 = vector.load %arg10[%c2_83, %c0_84, %c0_85] : memref<5x80x128xf32, #tpu.memory_space<vmem>>, vector<1x80x128xf32>
    %99 = vector.shape_cast %98 : vector<1x80x128xf32> to vector<80x128xf32>
    %cst_86 = arith.constant dense<0.000000e+00> : vector<1x128xf32>
    %100 = tpu.matmul %97, %99, %cst_86 {dimension_numbers = #tpu.dot_dimension_numbers<[1], [0], [0], [1], [0, 0, 1, 1], [], []>} : vector<1x80xf32>, vector<80x128xf32>, vector<1x128xf32> -> vector<1x128xf32>
    %101 = arith.addf %96, %100 : vector<1x128xf32>
    %102 = vector.extract_strided_slice %87 {offsets = [3, 0], sizes = [1, 80], strides = [1, 1]} : vector<5x80xf32> to vector<1x80xf32>
    %c3_87 = arith.constant 3 : index
    %c0_88 = arith.constant 0 : index
    %c0_89 = arith.constant 0 : index
    %103 = vector.load %arg10[%c3_87, %c0_88, %c0_89] : memref<5x80x128xf32, #tpu.memory_space<vmem>>, vector<1x80x128xf32>
    %104 = vector.shape_cast %103 : vector<1x80x128xf32> to vector<80x128xf32>
    %cst_90 = arith.constant dense<0.000000e+00> : vector<1x128xf32>
    %105 = tpu.matmul %102, %104, %cst_90 {dimension_numbers = #tpu.dot_dimension_numbers<[1], [0], [0], [1], [0, 0, 1, 1], [], []>} : vector<1x80xf32>, vector<80x128xf32>, vector<1x128xf32> -> vector<1x128xf32>
    %106 = arith.addf %101, %105 : vector<1x128xf32>
    %107 = vector.extract_strided_slice %87 {offsets = [4, 0], sizes = [1, 80], strides = [1, 1]} : vector<5x80xf32> to vector<1x80xf32>
    %c4_91 = arith.constant 4 : index
    %c0_92 = arith.constant 0 : index
    %c0_93 = arith.constant 0 : index
    %108 = vector.load %arg10[%c4_91, %c0_92, %c0_93] : memref<5x80x128xf32, #tpu.memory_space<vmem>>, vector<1x80x128xf32>
    %109 = vector.shape_cast %108 : vector<1x80x128xf32> to vector<80x128xf32>
    %cst_94 = arith.constant dense<0.000000e+00> : vector<1x128xf32>
    %110 = tpu.matmul %107, %109, %cst_94 {dimension_numbers = #tpu.dot_dimension_numbers<[1], [0], [0], [1], [0, 0, 1, 1], [], []>} : vector<1x80xf32>, vector<80x128xf32>, vector<1x128xf32> -> vector<1x128xf32>
    %111 = arith.addf %106, %110 : vector<1x128xf32>
    %c0_95 = arith.constant 0 : index
    %c0_96 = arith.constant 0 : index
    %112 = vector.load %arg11[%c0_95, %c0_96] : memref<1x128xf32, #tpu.memory_space<vmem>>, vector<1x128xf32>
    %113 = arith.addf %111, %112 : vector<1x128xf32>
    %cst_97 = arith.constant 0.000000e+00 : f32
    %114 = vector.broadcast %cst_97 : f32 to vector<1x128xf32>
    %115 = arith.maximumf %113, %114 : vector<1x128xf32>
    %c0_98 = arith.constant 0 : index
    %c0_99 = arith.constant 0 : index
    %116 = vector.load %arg12[%c0_98, %c0_99] : memref<128x128xf32, #tpu.memory_space<vmem>>, vector<128x128xf32>
    %cst_100 = arith.constant dense<0.000000e+00> : vector<1x128xf32>
    %117 = tpu.matmul %115, %116, %cst_100 {dimension_numbers = #tpu.dot_dimension_numbers<[1], [0], [0], [1], [0, 0, 1, 1], [], []>} : vector<1x128xf32>, vector<128x128xf32>, vector<1x128xf32> -> vector<1x128xf32>
    %c0_101 = arith.constant 0 : index
    %c0_102 = arith.constant 0 : index
    %118 = vector.load %arg13[%c0_101, %c0_102] : memref<1x128xf32, #tpu.memory_space<vmem>>, vector<1x128xf32>
    %119 = arith.addf %117, %118 : vector<1x128xf32>
    %cst_103 = arith.constant 0.000000e+00 : f32
    %120 = vector.broadcast %cst_103 : f32 to vector<1x128xf32>
    %121 = arith.maximumf %119, %120 : vector<1x128xf32>
    %c0_104 = arith.constant 0 : index
    %c0_105 = arith.constant 0 : index
    %122 = vector.load %arg14[%c0_104, %c0_105] : memref<128x128xf32, #tpu.memory_space<vmem>>, vector<128x128xf32>
    %cst_106 = arith.constant dense<0.000000e+00> : vector<1x128xf32>
    %123 = tpu.matmul %121, %122, %cst_106 {dimension_numbers = #tpu.dot_dimension_numbers<[1], [0], [0], [1], [0, 0, 1, 1], [], []>} : vector<1x128xf32>, vector<128x128xf32>, vector<1x128xf32> -> vector<1x128xf32>
    %c0_107 = arith.constant 0 : index
    %c0_108 = arith.constant 0 : index
    %124 = vector.load %arg15[%c0_107, %c0_108] : memref<1x128xf32, #tpu.memory_space<vmem>>, vector<1x128xf32>
    %125 = arith.addf %123, %124 : vector<1x128xf32>
    %c0_109 = arith.constant 0 : index
    %c0_110 = arith.constant 0 : index
    %c0_111 = arith.constant 0 : index
    %126 = vector.load %arg16[%c0_109, %c0_110, %c0_111] : memref<1x1x128xf32, #tpu.memory_space<vmem>>, vector<1x1x128xf32>
    %127 = vector.shape_cast %126 : vector<1x1x128xf32> to vector<1x128xf32>
    %128 = vector.shape_cast %125 : vector<1x128xf32> to vector<1x1x128xf32>
    tpu.vector_store %arg16[%c0_109, %c0_110, %c0_111], %128 {strides = array<i32>} : memref<1x1x128xf32, #tpu.memory_space<vmem>>, vector<1x1x128xf32>,
    return
  }
  func.func @transform_0(%arg0: i32) -> (i32, i32, i32) {
    %c0_i32 = arith.constant 0 : i32
    %c0_i32_0 = arith.constant 0 : i32
    %c0_i32_1 = arith.constant 0 : i32
    return %arg0, %c0_i32, %c0_i32_0 : i32, i32, i32
  }
  func.func @transform_1(%arg0: i32) -> (i32, i32, i32) {
    %c0_i32 = arith.constant 0 : i32
    %c0_i32_0 = arith.constant 0 : i32
    %c0_i32_1 = arith.constant 0 : i32
    %c0_i32_2 = arith.constant 0 : i32
    return %c0_i32, %c0_i32_0, %c0_i32_1 : i32, i32, i32
  }
  func.func @transform_2(%arg0: i32) -> (i32, i32) {
    %c0_i32 = arith.constant 0 : i32
    %c0_i32_0 = arith.constant 0 : i32
    %c0_i32_1 = arith.constant 0 : i32
    return %c0_i32, %c0_i32_0 : i32, i32
  }
  func.func @transform_3(%arg0: i32) -> (i32, i32, i32) {
    %c0_i32 = arith.constant 0 : i32
    %c0_i32_0 = arith.constant 0 : i32
    %c0_i32_1 = arith.constant 0 : i32
    %c0_i32_2 = arith.constant 0 : i32
    return %c0_i32, %c0_i32_0, %c0_i32_1 : i32, i32, i32
  }
  func.func @transform_4(%arg0: i32) -> (i32, i32, i32) {
    %c0_i32 = arith.constant 0 : i32
    %c0_i32_0 = arith.constant 0 : i32
    %c0_i32_1 = arith.constant 0 : i32
    %c0_i32_2 = arith.constant 0 : i32
    return %c0_i32, %c0_i32_0, %c0_i32_1 : i32, i32, i32
  }
  func.func @transform_5(%arg0: i32) -> (i32, i32, i32) {
    %c0_i32 = arith.constant 0 : i32
    %c0_i32_0 = arith.constant 0 : i32
    %c0_i32_1 = arith.constant 0 : i32
    %c0_i32_2 = arith.constant 0 : i32
    return %c0_i32, %c0_i32_0, %c0_i32_1 : i32, i32, i32
  }
  func.func @transform_6(%arg0: i32) -> (i32, i32) {
    %c0_i32 = arith.constant 0 : i32
    %c0_i32_0 = arith.constant 0 : i32
    %c0_i32_1 = arith.constant 0 : i32
    return %c0_i32, %c0_i32_0 : i32, i32
  }
  func.func @transform_7(%arg0: i32) -> (i32, i32, i32) {
    %c0_i32 = arith.constant 0 : i32
    %c0_i32_0 = arith.constant 0 : i32
    %c0_i32_1 = arith.constant 0 : i32
    %c0_i32_2 = arith.constant 0 : i32
    return %c0_i32, %c0_i32_0, %c0_i32_1 : i32, i32, i32
  }
  func.func @transform_8(%arg0: i32) -> (i32, i32, i32) {
    %c0_i32 = arith.constant 0 : i32
    %c0_i32_0 = arith.constant 0 : i32
    %c0_i32_1 = arith.constant 0 : i32
    %c0_i32_2 = arith.constant 0 : i32
    return %c0_i32, %c0_i32_0, %c0_i32_1 : i32, i32, i32
  }
  func.func @transform_9(%arg0: i32) -> (i32, i32, i32) {
    %c0_i32 = arith.constant 0 : i32
    %c0_i32_0 = arith.constant 0 : i32
    %c0_i32_1 = arith.constant 0 : i32
    %c0_i32_2 = arith.constant 0 : i32
    return %c0_i32, %c0_i32_0, %c0_i32_1 : i32, i32, i32
  }
  func.func @transform_10(%arg0: i32) -> (i32, i32) {
    %c0_i32 = arith.constant 0 : i32
    %c0_i32_0 = arith.constant 0 : i32
    %c0_i32_1 = arith.constant 0 : i32
    return %c0_i32, %c0_i32_0 : i32, i32
  }
  func.func @transform_11(%arg0: i32) -> (i32, i32) {
    %c0_i32 = arith.constant 0 : i32
    %c0_i32_0 = arith.constant 0 : i32
    %c0_i32_1 = arith.constant 0 : i32
    return %c0_i32, %c0_i32_0 : i32, i32
  }
  func.func @transform_12(%arg0: i32) -> (i32, i32) {
    %c0_i32 = arith.constant 0 : i32
    %c0_i32_0 = arith.constant 0 : i32
    %c0_i32_1 = arith.constant 0 : i32
    return %c0_i32, %c0_i32_0 : i32, i32
  }
  func.func @transform_13(%arg0: i32) -> (i32, i32) {
    %c0_i32 = arith.constant 0 : i32
    %c0_i32_0 = arith.constant 0 : i32
    %c0_i32_1 = arith.constant 0 : i32
    return %c0_i32, %c0_i32_0 : i32, i32
  }
  func.func @transform_14(%arg0: i32) -> (i32, i32) {
    %c0_i32 = arith.constant 0 : i32
    %c0_i32_0 = arith.constant 0 : i32
    %c0_i32_1 = arith.constant 0 : i32
    return %c0_i32, %c0_i32_0 : i32, i32
  }
  func.func @transform_15(%arg0: i32) -> (i32, i32, i32) {
    %c0_i32 = arith.constant 0 : i32
    %c0_i32_0 = arith.constant 0 : i32
    %c0_i32_1 = arith.constant 0 : i32
    return %arg0, %c0_i32, %c0_i32_0 : i32, i32, i32
  }
}

</mosaic_0001>

<llo_original>
// kernel: net_forward.1
$region0: #{net_forward.1}
  #allocation0 [shape = 'u32[]', space=smem, size = 0x4, offset = 0x4, fixed_abs, tag = 'smem constant byte address 0x4 - core index']
  #allocation1 [shape = 'u32[72,128]{1,0:T(1,128)}', space=vmem, size = 0x9000, scoped, tag = 'internal scratch']
  %s0 = inlined_call_operand.vmem [shape: f32[2,32,32], index: 0, kind: input, shape index: {}]
  %s1 = inlined_call_operand.vmem [shape: f32[5,32,168], index: 1, kind: input, shape index: {}]
  %s2 = inlined_call_operand.vmem [shape: f32[1,168], index: 2, kind: input, shape index: {}]
  %s3 = inlined_call_operand.vmem [shape: f32[2,14,28], index: 3, kind: input, shape index: {}]
  %s4 = inlined_call_operand.vmem [shape: f32[2,168,84], index: 4, kind: input, shape index: {}]
  %s5 = inlined_call_operand.vmem [shape: f32[5,84,160], index: 5, kind: input, shape index: {}]
  %s6 = inlined_call_operand.vmem [shape: f32[1,160], index: 6, kind: input, shape index: {}]
  %s7 = inlined_call_operand.vmem [shape: f32[2,5,10], index: 7, kind: input, shape index: {}]
  %s8 = inlined_call_operand.vmem [shape: f32[2,160,80], index: 8, kind: input, shape index: {}]
  %s9 = inlined_call_operand.vmem [shape: f32[5,80,128], index: 9, kind: input, shape index: {}]
  %s10 = inlined_call_operand.vmem [shape: f32[1,128], index: 10, kind: input, shape index: {}]
  %s11 = inlined_call_operand.vmem [shape: f32[128,128], index: 11, kind: input, shape index: {}]
  %s12 = inlined_call_operand.vmem [shape: f32[1,128], index: 12, kind: input, shape index: {}]
  %s13 = inlined_call_operand.vmem [shape: f32[128,128], index: 13, kind: input, shape index: {}]
  %s14 = inlined_call_operand.vmem [shape: f32[1,128], index: 14, kind: input, shape index: {}]
  %s15 = inlined_call_operand.hbm [shape: f32[2,1,128], index: 15, kind: output, shape index: {}]
  %s16 = sld [smem:[#allocation0]]
  $region93: #{net_forward.1} parent=0
    _
  %s18 = ssub.s32 1, %s16
  %s19 = scalar_select 0, %s18, %s16
  $region1: #{net_forward.1} parent=0
    #allocation2 [shape = 'u8[1024]{0}', space=vmem, size = 0x400, scoped, tag = 'output window, operand 0']
    #allocation3 [shape = 's32[2]{0}', space=sflag, size = 0x8, scoped, tag = 'scoped memory for net_forward.1']
    %20 = vsyncpa [#allocation3], 0
    %s21 = scalar_lea.sflag [#allocation3], 1
    %22 = vsyncpa %s21, 0
    loop: start=0, step=1, limit=4
    $region2: #{net_forward.1} parent=1 // loop_pre_header
      _
    $region3: #{net_forward.1} parent=1 // loop_header
      %s24 = sphi 0, %s28
      %p25 = scmp.ge.s32.totalorder %s24, 4
      %s34 = sphi 0, %s36
      %s37 = sphi 0, %s34
      %s38 = sphi 0, %s37
      %s54 = sphi 0, %s38
      %s58 = sphi 0, %s58
      %s60 = sphi 0, %s58
      %s61 = sphi 0, %s60
      %s75 = sphi 0, %s61
      %s79 = sphi 0, %s79
      %s81 = sphi 0, %s79
      %s82 = sphi 0, %s81
      %s96 = sphi 0, %s82
      %s100 = sphi 0, %s100
      %s102 = sphi 0, %s100
      %s103 = sphi 0, %s102
      %s117 = sphi 0, %s103
      %s121 = sphi 0, %s121
      %s123 = sphi 0, %s121
      %s124 = sphi 0, %s123
      %s138 = sphi 0, %s124
      %s142 = sphi 0, %s142
      %s144 = sphi 0, %s142
      %s145 = sphi 0, %s144
      %s159 = sphi 0, %s145
      %s163 = sphi 0, %s163
      %s165 = sphi 0, %s163
      %s166 = sphi 0, %s165
      %s180 = sphi 0, %s166
      %s184 = sphi 0, %s184
      %s186 = sphi 0, %s184
      %s187 = sphi 0, %s186
      %s201 = sphi 0, %s187
      %s205 = sphi 0, %s205
      %s207 = sphi 0, %s205
      %s208 = sphi 0, %s207
      %s222 = sphi 0, %s208
      %s226 = sphi 0, %s226
      %s228 = sphi 0, %s226
      %s229 = sphi 0, %s228
      %s243 = sphi 0, %s229
      %s247 = sphi 0, %s247
      %s249 = sphi 0, %s247
      %s250 = sphi 0, %s249
      %s264 = sphi 0, %s250
      %s268 = sphi 0, %s268
      %s270 = sphi 0, %s268
      %s271 = sphi 0, %s270
      %s285 = sphi 0, %s271
      %s289 = sphi 0, %s289
      %s291 = sphi 0, %s289
      %s292 = sphi 0, %s291
      %s306 = sphi 0, %s292
      %s310 = sphi 0, %s310
      %s312 = sphi 0, %s310
      %s313 = sphi 0, %s312
      %s327 = sphi 0, %s313
      %s331 = sphi 0, %s331
      %s333 = sphi 0, %s331
      %s334 = sphi 0, %s333
      %s348 = sphi 0, %s334
      %s354 = sphi 0, %s356
      %s357 = sphi 0, %s354
      %s358 = sphi 0, %s357
      %s374 = sphi 0, %s358
    $region4: #{net_forward.1} parent=1 // loop_header_branch
      %27 = sbr.rel (%p25) target = $region8
    $region5: #{net_forward.1} parent=1 // loop_body
      %s29 = ssub.s32 %s24, 1
      %s30 = ssub.s32 %s24, 2
      %s31 = sadd.s32 %s24, 1
      %s32 = ssub.s32 %s24, %s31
      %p33 = scmp.eq.s32.totalorder %s32, 0
      %s35 = sadd.s32 %s34, 1
      %s36 = scalar_select %p33, %s34, %s35
      %p39 = pneg %p33
      %p40 = scmp.eq.s32.totalorder %s24, 1
      %p41 = por %p39, %p40
      %p42 = scmp.ne.s32.totalorder %s34, %s37
      %p43 = scmp.eq.s32.totalorder %s24, 0
      %p44 = por %p42, %p43
      %p45 = scmp.ne.s32.totalorder %s34, %s37
      %p46 = scmp.eq.s32.totalorder %s29, 1
      %p47 = por %p45, %p46
      %p48 = scmp.ne.s32.totalorder %s37, %s38
      %p49 = scmp.eq.s32.totalorder %s29, 0
      %p50 = por %p48, %p49
      %p51 = scmp.ne.s32.totalorder %s37, %s38
      %p52 = scmp.eq.s32.totalorder %s30, 1
      %p53 = por %p51, %p52
      %p55 = scmp.ne.s32.totalorder %s38, %s54
      %p56 = scmp.eq.s32.totalorder %s30, 0
      %p57 = por %p55, %p56
      %s59 = sadd.s32 %s58, 1
      %p62 = scmp.eq.s32.totalorder %s24, 1
      %p63 = scmp.ne.s32.totalorder %s58, %s60
      %p64 = scmp.eq.s32.totalorder %s24, 0
      %p65 = por %p63, %p64
      %p66 = scmp.ne.s32.totalorder %s58, %s60
      %p67 = scmp.eq.s32.totalorder %s29, 1
      %p68 = por %p66, %p67
      %p69 = scmp.ne.s32.totalorder %s60, %s61
      %p70 = scmp.eq.s32.totalorder %s29, 0
      %p71 = por %p69, %p70
      %p72 = scmp.ne.s32.totalorder %s60, %s61
      %p73 = scmp.eq.s32.totalorder %s30, 1
      %p74 = por %p72, %p73
      %p76 = scmp.ne.s32.totalorder %s61, %s75
      %p77 = scmp.eq.s32.totalorder %s30, 0
      %p78 = por %p76, %p77
      %s80 = sadd.s32 %s79, 1
      %p83 = scmp.eq.s32.totalorder %s24, 1
      %p84 = scmp.ne.s32.totalorder %s79, %s81
      %p85 = scmp.eq.s32.totalorder %s24, 0
      %p86 = por %p84, %p85
      %p87 = scmp.ne.s32.totalorder %s79, %s81
      %p88 = scmp.eq.s32.totalorder %s29, 1
      %p89 = por %p87, %p88
      %p90 = scmp.ne.s32.totalorder %s81, %s82
      %p91 = scmp.eq.s32.totalorder %s29, 0
      %p92 = por %p90, %p91
      %p93 = scmp.ne.s32.totalorder %s81, %s82
      %p94 = scmp.eq.s32.totalorder %s30, 1
      %p95 = por %p93, %p94
      %p97 = scmp.ne.s32.totalorder %s82, %s96
      %p98 = scmp.eq.s32.totalorder %s30, 0
      %p99 = por %p97, %p98
      %s101 = sadd.s32 %s100, 1
      %p104 = scmp.eq.s32.totalorder %s24, 1
      %p105 = scmp.ne.s32.totalorder %s100, %s102
      %p106 = scmp.eq.s32.totalorder %s24, 0
      %p107 = por %p105, %p106
      %p108 = scmp.ne.s32.totalorder %s100, %s102
      %p109 = scmp.eq.s32.totalorder %s29, 1
      %p110 = por %p108, %p109
      %p111 = scmp.ne.s32.totalorder %s102, %s103
      %p112 = scmp.eq.s32.totalorder %s29, 0
      %p113 = por %p111, %p112
      %p114 = scmp.ne.s32.totalorder %s102, %s103
      %p115 = scmp.eq.s32.totalorder %s30, 1
      %p116 = por %p114, %p115
      %p118 = scmp.ne.s32.totalorder %s103, %s117
      %p119 = scmp.eq.s32.totalorder %s30, 0
      %p120 = por %p118, %p119
      %s122 = sadd.s32 %s121, 1
      %p125 = scmp.eq.s32.totalorder %s24, 1
      %p126 = scmp.ne.s32.totalorder %s121, %s123
      %p127 = scmp.eq.s32.totalorder %s24, 0
      %p128 = por %p126, %p127
      %p129 = scmp.ne.s32.totalorder %s121, %s123
      %p130 = scmp.eq.s32.totalorder %s29, 1
      %p131 = por %p129, %p130
      %p132 = scmp.ne.s32.totalorder %s123, %s124
      %p133 = scmp.eq.s32.totalorder %s29, 0
      %p134 = por %p132, %p133
      %p135 = scmp.ne.s32.totalorder %s123, %s124
      %p136 = scmp.eq.s32.totalorder %s30, 1
      %p137 = por %p135, %p136
      %p139 = scmp.ne.s32.totalorder %s124, %s138
      %p140 = scmp.eq.s32.totalorder %s30, 0
      %p141 = por %p139, %p140
      %s143 = sadd.s32 %s142, 1
      %p146 = scmp.eq.s32.totalorder %s24, 1
      %p147 = scmp.ne.s32.totalorder %s142, %s144
      %p148 = scmp.eq.s32.totalorder %s24, 0
      %p149 = por %p147, %p148
      %p150 = scmp.ne.s32.totalorder %s142, %s144
      %p151 = scmp.eq.s32.totalorder %s29, 1
      %p152 = por %p150, %p151
      %p153 = scmp.ne.s32.totalorder %s144, %s145
      %p154 = scmp.eq.s32.totalorder %s29, 0
      %p155 = por %p153, %p154
      %p156 = scmp.ne.s32.totalorder %s144, %s145
      %p157 = scmp.eq.s32.totalorder %s30, 1
      %p158 = por %p156, %p157
      %p160 = scmp.ne.s32.totalorder %s145, %s159
      %p161 = scmp.eq.s32.totalorder %s30, 0
      %p162 = por %p160, %p161
      %s164 = sadd.s32 %s163, 1
      %p167 = scmp.eq.s32.totalorder %s24, 1
      %p168 = scmp.ne.s32.totalorder %s163, %s165
      %p169 = scmp.eq.s32.totalorder %s24, 0
      %p170 = por %p168, %p169
      %p171 = scmp.ne.s32.totalorder %s163, %s165
      %p172 = scmp.eq.s32.totalorder %s29, 1
      %p173 = por %p171, %p172
      %p174 = scmp.ne.s32.totalorder %s165, %s166
      %p175 = scmp.eq.s32.totalorder %s29, 0
      %p176 = por %p174, %p175
      %p177 = scmp.ne.s32.totalorder %s165, %s166
      %p178 = scmp.eq.s32.totalorder %s30, 1
      %p179 = por %p177, %p178
      %p181 = scmp.ne.s32.totalorder %s166, %s180
      %p182 = scmp.eq.s32.totalorder %s30, 0
      %p183 = por %p181, %p182
      %s185 = sadd.s32 %s184, 1
      %p188 = scmp.eq.s32.totalorder %s24, 1
      %p189 = scmp.ne.s32.totalorder %s184, %s186
      %p190 = scmp.eq.s32.totalorder %s24, 0
      %p191 = por %p189, %p190
      %p192 = scmp.ne.s32.totalorder %s184, %s186
      %p193 = scmp.eq.s32.totalorder %s29, 1
      %p194 = por %p192, %p193
      %p195 = scmp.ne.s32.totalorder %s186, %s187
      %p196 = scmp.eq.s32.totalorder %s29, 0
      %p197 = por %p195, %p196
      %p198 = scmp.ne.s32.totalorder %s186, %s187
      %p199 = scmp.eq.s32.totalorder %s30, 1
      %p200 = por %p198, %p199
      %p202 = scmp.ne.s32.totalorder %s187, %s201
      %p203 = scmp.eq.s32.totalorder %s30, 0
      %p204 = por %p202, %p203
      %s206 = sadd.s32 %s205, 1
      %p209 = scmp.eq.s32.totalorder %s24, 1
      %p210 = scmp.ne.s32.totalorder %s205, %s207
      %p211 = scmp.eq.s32.totalorder %s24, 0
      %p212 = por %p210, %p211
      %p213 = scmp.ne.s32.totalorder %s205, %s207
      %p214 = scmp.eq.s32.totalorder %s29, 1
      %p215 = por %p213, %p214
      %p216 = scmp.ne.s32.totalorder %s207, %s208
      %p217 = scmp.eq.s32.totalorder %s29, 0
      %p218 = por %p216, %p217
      %p219 = scmp.ne.s32.totalorder %s207, %s208
      %p220 = scmp.eq.s32.totalorder %s30, 1
      %p221 = por %p219, %p220
      %p223 = scmp.ne.s32.totalorder %s208, %s222
      %p224 = scmp.eq.s32.totalorder %s30, 0
      %p225 = por %p223, %p224
      %s227 = sadd.s32 %s226, 1
      %p230 = scmp.eq.s32.totalorder %s24, 1
      %p231 = scmp.ne.s32.totalorder %s226, %s228
      %p232 = scmp.eq.s32.totalorder %s24, 0
      %p233 = por %p231, %p232
      %p234 = scmp.ne.s32.totalorder %s226, %s228
      %p235 = scmp.eq.s32.totalorder %s29, 1
      %p236 = por %p234, %p235
      %p237 = scmp.ne.s32.totalorder %s228, %s229
      %p238 = scmp.eq.s32.totalorder %s29, 0
      %p239 = por %p237, %p238
      %p240 = scmp.ne.s32.totalorder %s228, %s229
      %p241 = scmp.eq.s32.totalorder %s30, 1
      %p242 = por %p240, %p241
      %p244 = scmp.ne.s32.totalorder %s229, %s243
      %p245 = scmp.eq.s32.totalorder %s30, 0
      %p246 = por %p244, %p245
      %s248 = sadd.s32 %s247, 1
      %p251 = scmp.eq.s32.totalorder %s24, 1
      %p252 = scmp.ne.s32.totalorder %s247, %s249
      %p253 = scmp.eq.s32.totalorder %s24, 0
      %p254 = por %p252, %p253
      %p255 = scmp.ne.s32.totalorder %s247, %s249
      %p256 = scmp.eq.s32.totalorder %s29, 1
      %p257 = por %p255, %p256
      %p258 = scmp.ne.s32.totalorder %s249, %s250
      %p259 = scmp.eq.s32.totalorder %s29, 0
      %p260 = por %p258, %p259
      %p261 = scmp.ne.s32.totalorder %s249, %s250
      %p262 = scmp.eq.s32.totalorder %s30, 1
      %p263 = por %p261, %p262
      %p265 = scmp.ne.s32.totalorder %s250, %s264
      %p266 = scmp.eq.s32.totalorder %s30, 0
      %p267 = por %p265, %p266
      %s269 = sadd.s32 %s268, 1
      %p272 = scmp.eq.s32.totalorder %s24, 1
      %p273 = scmp.ne.s32.totalorder %s268, %s270
      %p274 = scmp.eq.s32.totalorder %s24, 0
      %p275 = por %p273, %p274
      %p276 = scmp.ne.s32.totalorder %s268, %s270
      %p277 = scmp.eq.s32.totalorder %s29, 1
      %p278 = por %p276, %p277
      %p279 = scmp.ne.s32.totalorder %s270, %s271
      %p280 = scmp.eq.s32.totalorder %s29, 0
      %p281 = por %p279, %p280
      %p282 = scmp.ne.s32.totalorder %s270, %s271
      %p283 = scmp.eq.s32.totalorder %s30, 1
      %p284 = por %p282, %p283
      %p286 = scmp.ne.s32.totalorder %s271, %s285
      %p287 = scmp.eq.s32.totalorder %s30, 0
      %p288 = por %p286, %p287
      %s290 = sadd.s32 %s289, 1
      %p293 = scmp.eq.s32.totalorder %s24, 1
      %p294 = scmp.ne.s32.totalorder %s289, %s291
      %p295 = scmp.eq.s32.totalorder %s24, 0
      %p296 = por %p294, %p295
      %p297 = scmp.ne.s32.totalorder %s289, %s291
      %p298 = scmp.eq.s32.totalorder %s29, 1
      %p299 = por %p297, %p298
      %p300 = scmp.ne.s32.totalorder %s291, %s292
      %p301 = scmp.eq.s32.totalorder %s29, 0
      %p302 = por %p300, %p301
      %p303 = scmp.ne.s32.totalorder %s291, %s292
      %p304 = scmp.eq.s32.totalorder %s30, 1
      %p305 = por %p303, %p304
      %p307 = scmp.ne.s32.totalorder %s292, %s306
      %p308 = scmp.eq.s32.totalorder %s30, 0
      %p309 = por %p307, %p308
      %s311 = sadd.s32 %s310, 1
      %p314 = scmp.eq.s32.totalorder %s24, 1
      %p315 = scmp.ne.s32.totalorder %s310, %s312
      %p316 = scmp.eq.s32.totalorder %s24, 0
      %p317 = por %p315, %p316
      %p318 = scmp.ne.s32.totalorder %s310, %s312
      %p319 = scmp.eq.s32.totalorder %s29, 1
      %p320 = por %p318, %p319
      %p321 = scmp.ne.s32.totalorder %s312, %s313
      %p322 = scmp.eq.s32.totalorder %s29, 0
      %p323 = por %p321, %p322
      %p324 = scmp.ne.s32.totalorder %s312, %s313
      %p325 = scmp.eq.s32.totalorder %s30, 1
      %p326 = por %p324, %p325
      %p328 = scmp.ne.s32.totalorder %s313, %s327
      %p329 = scmp.eq.s32.totalorder %s30, 0
      %p330 = por %p328, %p329
      %s332 = sadd.s32 %s331, 1
      %p335 = scmp.eq.s32.totalorder %s24, 1
      %p336 = scmp.ne.s32.totalorder %s331, %s333
      %p337 = scmp.eq.s32.totalorder %s24, 0
      %p338 = por %p336, %p337
      %p339 = scmp.ne.s32.totalorder %s331, %s333
      %p340 = scmp.eq.s32.totalorder %s29, 1
      %p341 = por %p339, %p340
      %p342 = scmp.ne.s32.totalorder %s333, %s334
      %p343 = scmp.eq.s32.totalorder %s29, 0
      %p344 = por %p342, %p343
      %p345 = scmp.ne.s32.totalorder %s333, %s334
      %p346 = scmp.eq.s32.totalorder %s30, 1
      %p347 = por %p345, %p346
      %p349 = scmp.ne.s32.totalorder %s334, %s348
      %p350 = scmp.eq.s32.totalorder %s30, 0
      %p351 = por %p349, %p350
      %s352 = ssub.s32 %s24, %s31
      %p353 = scmp.eq.s32.totalorder %s352, 0
      %s355 = sadd.s32 %s354, 1
      %s356 = scalar_select %p353, %s354, %s355
      %p359 = pneg %p353
      %p360 = scmp.eq.s32.totalorder %s24, 1
      %p361 = por %p359, %p360
      %p362 = scmp.ne.s32.totalorder %s354, %s357
      %p363 = scmp.eq.s32.totalorder %s24, 0
      %p364 = por %p362, %p363
      %p365 = scmp.ne.s32.totalorder %s354, %s357
      %p366 = scmp.eq.s32.totalorder %s29, 1
      %p367 = por %p365, %p366
      %p368 = scmp.ne.s32.totalorder %s357, %s358
      %p369 = scmp.eq.s32.totalorder %s29, 0
      %p370 = por %p368, %p369
      %p371 = scmp.ne.s32.totalorder %s357, %s358
      %p372 = scmp.eq.s32.totalorder %s30, 1
      %p373 = por %p371, %p372
      %p375 = scmp.ne.s32.totalorder %s358, %s374
      %p376 = scmp.eq.s32.totalorder %s30, 0
      %p377 = por %p375, %p376
      %p378 = scmp.le.s32.totalorder 1, %s24
      %p379 = scmp.lt.s32.totalorder %s24, 3
      %p380 = pnand %p378, %p379
      %p381 = pneg %p380
      // Predicated region
      $region9: #{net_forward.1} parent=5 // pred_check
        _
      $region10: #{net_forward.1} parent=5 // pred_check_branch
        %383 = sbr.rel (%p380) target = $region12
      $region11: #{net_forward.1} parent=5 // pred_region
        %s384 = ssub.s32 %s24, 1
        // Predicated region
        $region13: #{net_forward.1} parent=11 // pred_check
          %p385 = pneg %p71
        $region14: #{net_forward.1} parent=11 // pred_check_branch
          %387 = sbr.rel (%p385) target = $region16
        $region15: #{net_forward.1} parent=11 // pred_region
          _
        $region16: #{net_forward.1} parent=11 // pred_fallthru
          _
        // Predicated region
        $region17: #{net_forward.1} parent=11 // pred_check
          %p388 = pneg %p92
        $region18: #{net_forward.1} parent=11 // pred_check_branch
          %390 = sbr.rel (%p388) target = $region20
        $region19: #{net_forward.1} parent=11 // pred_region
          _
        $region20: #{net_forward.1} parent=11 // pred_fallthru
          _
        // Predicated region
        $region21: #{net_forward.1} parent=11 // pred_check
          %p391 = pneg %p113
        $region22: #{net_forward.1} parent=11 // pred_check_branch
          %393 = sbr.rel (%p391) target = $region24
        $region23: #{net_forward.1} parent=11 // pred_region
          _
        $region24: #{net_forward.1} parent=11 // pred_fallthru
          _
        // Predicated region
        $region25: #{net_forward.1} parent=11 // pred_check
          %p394 = pneg %p134
        $region26: #{net_forward.1} parent=11 // pred_check_branch
          %396 = sbr.rel (%p394) target = $region28
        $region27: #{net_forward.1} parent=11 // pred_region
          _
        $region28: #{net_forward.1} parent=11 // pred_fallthru
          _
        // Predicated region
        $region29: #{net_forward.1} parent=11 // pred_check
          %p397 = pneg %p155
        $region30: #{net_forward.1} parent=11 // pred_check_branch
          %399 = sbr.rel (%p397) target = $region32
        $region31: #{net_forward.1} parent=11 // pred_region
          _
        $region32: #{net_forward.1} parent=11 // pred_fallthru
          _
        // Predicated region
        $region33: #{net_forward.1} parent=11 // pred_check
          %p400 = pneg %p176
        $region34: #{net_forward.1} parent=11 // pred_check_branch
          %402 = sbr.rel (%p400) target = $region36
        $region35: #{net_forward.1} parent=11 // pred_region
          _
        $region36: #{net_forward.1} parent=11 // pred_fallthru
          _
        // Predicated region
        $region37: #{net_forward.1} parent=11 // pred_check
          %p403 = pneg %p197
        $region38: #{net_forward.1} parent=11 // pred_check_branch
          %405 = sbr.rel (%p403) target = $region40
        $region39: #{net_forward.1} parent=11 // pred_region
          _
        $region40: #{net_forward.1} parent=11 // pred_fallthru
          _
        // Predicated region
        $region41: #{net_forward.1} parent=11 // pred_check
          %p406 = pneg %p218
        $region42: #{net_forward.1} parent=11 // pred_check_branch
          %408 = sbr.rel (%p406) target = $region44
        $region43: #{net_forward.1} parent=11 // pred_region
          _
        $region44: #{net_forward.1} parent=11 // pred_fallthru
          _
        // Predicated region
        $region45: #{net_forward.1} parent=11 // pred_check
          %p409 = pneg %p239
        $region46: #{net_forward.1} parent=11 // pred_check_branch
          %411 = sbr.rel (%p409) target = $region48
        $region47: #{net_forward.1} parent=11 // pred_region
          _
        $region48: #{net_forward.1} parent=11 // pred_fallthru
          _
        // Predicated region
        $region49: #{net_forward.1} parent=11 // pred_check
          %p412 = pneg %p260
        $region50: #{net_forward.1} parent=11 // pred_check_branch
          %414 = sbr.rel (%p412) target = $region52
        $region51: #{net_forward.1} parent=11 // pred_region
          _
        $region52: #{net_forward.1} parent=11 // pred_fallthru
          _
        // Predicated region
        $region53: #{net_forward.1} parent=11 // pred_check
          %p415 = pneg %p281
        $region54: #{net_forward.1} parent=11 // pred_check_branch
          %417 = sbr.rel (%p415) target = $region56
        $region55: #{net_forward.1} parent=11 // pred_region
          _
        $region56: #{net_forward.1} parent=11 // pred_fallthru
          _
        // Predicated region
        $region57: #{net_forward.1} parent=11 // pred_check
          %p418 = pneg %p302
        $region58: #{net_forward.1} parent=11 // pred_check_branch
          %420 = sbr.rel (%p418) target = $region60
        $region59: #{net_forward.1} parent=11 // pred_region
          _
        $region60: #{net_forward.1} parent=11 // pred_fallthru
          _
        // Predicated region
        $region61: #{net_forward.1} parent=11 // pred_check
          %p421 = pneg %p323
        $region62: #{net_forward.1} parent=11 // pred_check_branch
          %423 = sbr.rel (%p421) target = $region64
        $region63: #{net_forward.1} parent=11 // pred_region
          _
        $region64: #{net_forward.1} parent=11 // pred_fallthru
          _
        // Predicated region
        $region65: #{net_forward.1} parent=11 // pred_check
          %p424 = pneg %p344
        $region66: #{net_forward.1} parent=11 // pred_check_branch
          %426 = sbr.rel (%p424) target = $region68
        $region67: #{net_forward.1} parent=11 // pred_region
          _
        $region68: #{net_forward.1} parent=11 // pred_fallthru
          _
      $region12: #{net_forward.1} parent=5 // pred_fallthru
        _
      %p427 = scmp.lt.s32.totalorder %s24, 2
      // Predicated region
      $region69: #{net_forward.1} parent=5 // pred_check
        %p428 = pneg %p427
      $region70: #{net_forward.1} parent=5 // pred_check_branch
        %430 = sbr.rel (%p428) target = $region72
      $region71: #{net_forward.1} parent=5 // pred_region
        // Predicated region
        $region73: #{net_forward.1} parent=71 // pred_check
          %p431 = pneg %p44
        $region74: #{net_forward.1} parent=71 // pred_check_branch
          %433 = sbr.rel (%p431) target = $region76
        $region75: #{net_forward.1} parent=71 // pred_region
          %p434 = scmp.lt.s32.totalorder %s24, 1
          %s435 = scalar_select %p434, %s24, 1
          %s436 = smul.addr %s435, 4
          %s437 = smul.addr %s436, 8
          %s438 = scalar_lea.vmem %s0, %s437
        $region76: #{net_forward.1} parent=71 // pred_fallthru
          _
      $region72: #{net_forward.1} parent=5 // pred_fallthru
        _
      %p439 = scmp.le.s32.totalorder 1, %s24
      %p440 = scmp.lt.s32.totalorder %s24, 3
      %p441 = pnand %p439, %p440
      %p442 = pneg %p441
      // Predicated region
      $region77: #{net_forward.1} parent=5 // pred_check
        _
      $region78: #{net_forward.1} parent=5 // pred_check_branch
        %444 = sbr.rel (%p441) target = $region80
      $region79: #{net_forward.1} parent=5 // pred_region
        %s445 = ssub.s32 %s24, 1
        %p446 = scmp.lt.s32.totalorder %s29, 1
        %s447 = scalar_select %p446, %s29, 1
        %s448 = smul.addr %s447, 4
        %s449 = smul.addr %s448, 8
        %s450 = scalar_lea.vmem %s0, %s449
        %p451 = pneg %p50
        %p452 = pneg %p47
        %p453 = pneg %p71
        %p454 = pneg %p68
        %p455 = pneg %p92
        %p456 = pneg %p89
        %p457 = pneg %p113
        %p458 = pneg %p110
        %p459 = pneg %p134
        %p460 = pneg %p131
        %p461 = pneg %p155
        %p462 = pneg %p152
        %p463 = pneg %p176
        %p464 = pneg %p173
        %p465 = pneg %p197
        %p466 = pneg %p194
        %p467 = pneg %p218
        %p468 = pneg %p215
        %p469 = pneg %p239
        %p470 = pneg %p236
        %p471 = pneg %p260
        %p472 = pneg %p257
        %p473 = pneg %p281
        %p474 = pneg %p278
        %p475 = pneg %p302
        %p476 = pneg %p299
        %p477 = pneg %p323
        %p478 = pneg %p320
        %p479 = pneg %p344
        %p480 = pneg %p341
        %p481 = pneg %p370
        %p482 = pneg %p367
        %s483 = sand.u32 %s357, 1
        %s484 = scalar_lea.sflag [#allocation3], %s483
        %s485 = sand.u32 %s357, 1
        %s486 = scalar_lea.vmem [#allocation2], %s485
        %p487 = scmp.lt.s32.totalorder %s29, 1
        %s488 = scalar_select %p487, %s29, 1
        %s489 = smul.addr %s488, 4
        %s490 = smul.addr %s489, 8
        %s491 = scalar_lea.vmem %s0, %s490
        %v492 = vld [vmem:[%s491] sm:$0xff]
        %v493 = vld [vmem:[%s491 + $0x8] sm:$0xff]
        %v494 = vld [vmem:[%s491 + $0x10] sm:$0xff]
        %v495 = vld [vmem:[%s491 + $0x18] sm:$0xff]
        %v496 = vld [vmem:[%s1] sm:$0xff]
        %v497 = vld [vmem:[%s1 + $0x8] sm:$0xff]
        %v498 = vld [vmem:[%s1 + $0x10] sm:$0xff]
        %v499 = vld [vmem:[%s1 + $0x18] sm:$0xff]
        %v500 = vld [vmem:[%s1 + $0x20] sm:$0xff]
        %v501 = vld [vmem:[%s1 + $0x28] sm:$0xff]
        %v502 = vld [vmem:[%s1 + $0x30] sm:$0xff]
        %v503 = vld [vmem:[%s1 + $0x38] sm:$0xff]
        %s504 = scalar_lea.vmem %s1, 64
        %v505 = vld [vmem:[%s504] sm:$0xff]
        %v506 = vld [vmem:[%s504 + $0x8] sm:$0xff]
        %v507 = vld [vmem:[%s504 + $0x10] sm:$0xff]
        %v508 = vld [vmem:[%s504 + $0x18] sm:$0xff]
        %v509 = vld [vmem:[%s504 + $0x20] sm:$0xff]
        %v510 = vld [vmem:[%s504 + $0x28] sm:$0xff]
        %v511 = vld [vmem:[%s504 + $0x30] sm:$0xff]
        %v512 = vld [vmem:[%s504 + $0x38] sm:$0xff]
        %vm517 = vcmask 1046528
        %v518 = vrot.slane %v492, 1
        %v519 = vrot.slane %v493, 1
        %v520 = vsel %vm517, %v518, %v519
        %v521 = vrot.slane %v494, 1
        %v522 = vsel %vm517, %v519, %v521
        %v523 = vrot.slane %v495, 1
        %v524 = vsel %vm517, %v521, %v523
        %vm525 = vcmask 261120
        %v526 = vsel %vm525, %v520, 0
        %v528 = vsel %vm525, %v522, 0
        %v530 = vsel %vm525, %v524, 0
        %v532 = vsel %vm525, %v523, 0
        %534 = vmatpush.msra.mxu0 0.0
        %535 = vmatpush.msra.mxu0 0.0
        %536 = vmatpush.msra.mxu0 0.0
        %537 = vmatpush.msra.mxu0 0.0
        %538 = vmatpush.msra.mxu0 0.0
        %539 = vmatpush.msra.mxu0 0.0
        %540 = vmatpush.msra.mxu0 0.0
        %541 = vmatpush.msra.mxu0 0.0
        %542 = vmatpush.msra.mxu0 0.0
        %543 = vmatpush.msra.mxu0 0.0
        %544 = vmatpush.msra.mxu0 0.0
        %545 = vmatpush.msra.mxu0 0.0
        %546 = vmatpush.msra.mxu0 %v511
        %547 = vmatpush.msra.mxu0 %v509
        %548 = vmatpush.msra.mxu0 %v507
        %549 = vmatpush.msra.mxu0 %v505
        %550 = vmatmul.f32.gmra.mxu0 %v526
        %v551 = vpop.f32.mrf.mxu0
        %v552 = vadd.f32 0.0, %v551
        %553 = vmatmul.f32.gmra.mxu0 %v528
        %v554 = vpop.f32.mrf.mxu0
        %v555 = vadd.f32 0.0, %v554
        %556 = vmatmul.f32.gmra.mxu0 %v530
        %v557 = vpop.f32.mrf.mxu0
        %v558 = vadd.f32 0.0, %v557
        %559 = vmatmul.f32.gmra.mxu0 %v532
        %v560 = vpop.f32.mrf.mxu0
        %v561 = vadd.f32 0.0, %v560
        %562 = vdwg.mxu0
        %563 = vmatpush.msra.mxu0 0.0
        %564 = vmatpush.msra.mxu0 0.0
        %565 = vmatpush.msra.mxu0 0.0
        %566 = vmatpush.msra.mxu0 0.0
        %567 = vmatpush.msra.mxu0 0.0
        %568 = vmatpush.msra.mxu0 0.0
        %569 = vmatpush.msra.mxu0 0.0
        %570 = vmatpush.msra.mxu0 0.0
        %571 = vmatpush.msra.mxu0 0.0
        %572 = vmatpush.msra.mxu0 0.0
        %573 = vmatpush.msra.mxu0 0.0
        %574 = vmatpush.msra.mxu0 0.0
        %575 = vmatpush.msra.mxu0 %v512
        %576 = vmatpush.msra.mxu0 %v510
        %577 = vmatpush.msra.mxu0 %v508
        %578 = vmatpush.msra.mxu0 %v506
        %579 = vmatmul.f32.gmra.mxu0 %v526
        %v580 = vpop.f32.mrf.mxu0
        %v581 = vadd.f32 0.0, %v580
        %582 = vmatmul.f32.gmra.mxu0 %v528
        %v583 = vpop.f32.mrf.mxu0
        %v584 = vadd.f32 0.0, %v583
        %585 = vmatmul.f32.gmra.mxu0 %v530
        %v586 = vpop.f32.mrf.mxu0
        %v587 = vadd.f32 0.0, %v586
        %588 = vmatmul.f32.gmra.mxu0 %v532
        %v589 = vpop.f32.mrf.mxu0
        %v590 = vadd.f32 0.0, %v589
        %591 = vdwg.mxu0
        %v592 = vsel %vm525, %v492, 0
        %v594 = vsel %vm525, %v493, 0
        %v596 = vsel %vm525, %v494, 0
        %v598 = vsel %vm525, %v495, 0
        %600 = vmatpush.msra.mxu0 0.0
        %601 = vmatpush.msra.mxu0 0.0
        %602 = vmatpush.msra.mxu0 0.0
        %603 = vmatpush.msra.mxu0 0.0
        %604 = vmatpush.msra.mxu0 0.0
        %605 = vmatpush.msra.mxu0 0.0
        %606 = vmatpush.msra.mxu0 0.0
        %607 = vmatpush.msra.mxu0 0.0
        %608 = vmatpush.msra.mxu0 0.0
        %609 = vmatpush.msra.mxu0 0.0
        %610 = vmatpush.msra.mxu0 0.0
        %611 = vmatpush.msra.mxu0 0.0
        %612 = vmatpush.msra.mxu0 %v502
        %613 = vmatpush.msra.mxu0 %v500
        %614 = vmatpush.msra.mxu0 %v498
        %615 = vmatpush.msra.mxu0 %v496
        %616 = vmatmul.f32.gmra.mxu0 %v592
        %v617 = vpop.f32.mrf.mxu0
        %v618 = vadd.f32 %v552, %v617
        %619 = vmatmul.f32.gmra.mxu0 %v594
        %v620 = vpop.f32.mrf.mxu0
        %v621 = vadd.f32 %v555, %v620
        %622 = vmatmul.f32.gmra.mxu0 %v596
        %v623 = vpop.f32.mrf.mxu0
        %v624 = vadd.f32 %v558, %v623
        %625 = vmatmul.f32.gmra.mxu0 %v598
        %v626 = vpop.f32.mrf.mxu0
        %v627 = vadd.f32 %v561, %v626
        %628 = vdwg.mxu0
        %629 = vmatpush.msra.mxu0 0.0
        %630 = vmatpush.msra.mxu0 0.0
        %631 = vmatpush.msra.mxu0 0.0
        %632 = vmatpush.msra.mxu0 0.0
        %633 = vmatpush.msra.mxu0 0.0
        %634 = vmatpush.msra.mxu0 0.0
        %635 = vmatpush.msra.mxu0 0.0
        %636 = vmatpush.msra.mxu0 0.0
        %637 = vmatpush.msra.mxu0 0.0
        %638 = vmatpush.msra.mxu0 0.0
        %639 = vmatpush.msra.mxu0 0.0
        %640 = vmatpush.msra.mxu0 0.0
        %641 = vmatpush.msra.mxu0 %v503
        %642 = vmatpush.msra.mxu0 %v501
        %643 = vmatpush.msra.mxu0 %v499
        %644 = vmatpush.msra.mxu0 %v497
        %645 = vmatmul.f32.gmra.mxu0 %v592
        %v646 = vpop.f32.mrf.mxu0
        %v647 = vadd.f32 %v581, %v646
        %648 = vmatmul.f32.gmra.mxu0 %v594
        %v649 = vpop.f32.mrf.mxu0
        %v650 = vadd.f32 %v584, %v649
        %651 = vmatmul.f32.gmra.mxu0 %v596
        %v652 = vpop.f32.mrf.mxu0
        %v653 = vadd.f32 %v587, %v652
        %654 = vmatmul.f32.gmra.mxu0 %v598
        %v655 = vpop.f32.mrf.mxu0
        %v656 = vadd.f32 %v590, %v655
        %657 = vdwg.mxu0
        %s658 = scalar_lea.vmem %s1, 128
        %v659 = vld [vmem:[%s658] sm:$0xff]
        %v660 = vld [vmem:[%s658 + $0x8] sm:$0xff]
        %v661 = vld [vmem:[%s658 + $0x10] sm:$0xff]
        %v662 = vld [vmem:[%s658 + $0x18] sm:$0xff]
        %v663 = vld [vmem:[%s658 + $0x20] sm:$0xff]
        %v664 = vld [vmem:[%s658 + $0x28] sm:$0xff]
        %v665 = vld [vmem:[%s658 + $0x30] sm:$0xff]
        %v666 = vld [vmem:[%s658 + $0x38] sm:$0xff]
        %vm667 = vcmask 1045504
        %v668 = vrot.slane %v492, 2
        %v669 = vrot.slane %v493, 2
        %v670 = vsel %vm667, %v668, %v669
        %v671 = vrot.slane %v494, 2
        %v672 = vsel %vm667, %v669, %v671
        %v673 = vrot.slane %v495, 2
        %v674 = vsel %vm667, %v671, %v673
        %v675 = vsel %vm525, %v670, 0
        %v677 = vsel %vm525, %v672, 0
        %v679 = vsel %vm525, %v674, 0
        %v681 = vsel %vm525, %v673, 0
        %683 = vmatpush.msra.mxu0 0.0
        %684 = vmatpush.msra.mxu0 0.0
        %685 = vmatpush.msra.mxu0 0.0
        %686 = vmatpush.msra.mxu0 0.0
        %687 = vmatpush.msra.mxu0 0.0
        %688 = vmatpush.msra.mxu0 0.0
        %689 = vmatpush.msra.mxu0 0.0
        %690 = vmatpush.msra.mxu0 0.0
        %691 = vmatpush.msra.mxu0 0.0
        %692 = vmatpush.msra.mxu0 0.0
        %693 = vmatpush.msra.mxu0 0.0
        %694 = vmatpush.msra.mxu0 0.0
        %695 = vmatpush.msra.mxu0 %v665
        %696 = vmatpush.msra.mxu0 %v663
        %697 = vmatpush.msra.mxu0 %v661
        %698 = vmatpush.msra.mxu0 %v659
        %699 = vmatmul.f32.gmra.mxu0 %v675
        %v700 = vpop.f32.mrf.mxu0
        %v701 = vadd.f32 0.0, %v700
        %702 = vmatmul.f32.gmra.mxu0 %v677
        %v703 = vpop.f32.mrf.mxu0
        %v704 = vadd.f32 0.0, %v703
        %705 = vmatmul.f32.gmra.mxu0 %v679
        %v706 = vpop.f32.mrf.mxu0
        %v707 = vadd.f32 0.0, %v706
        %708 = vmatmul.f32.gmra.mxu0 %v681
        %v709 = vpop.f32.mrf.mxu0
        %v710 = vadd.f32 0.0, %v709
        %711 = vdwg.mxu0
        %712 = vmatpush.msra.mxu0 0.0
        %713 = vmatpush.msra.mxu0 0.0
        %714 = vmatpush.msra.mxu0 0.0
        %715 = vmatpush.msra.mxu0 0.0
        %716 = vmatpush.msra.mxu0 0.0
        %717 = vmatpush.msra.mxu0 0.0
        %718 = vmatpush.msra.mxu0 0.0
        %719 = vmatpush.msra.mxu0 0.0
        %720 = vmatpush.msra.mxu0 0.0
        %721 = vmatpush.msra.mxu0 0.0
        %722 = vmatpush.msra.mxu0 0.0
        %723 = vmatpush.msra.mxu0 0.0
        %724 = vmatpush.msra.mxu0 %v666
        %725 = vmatpush.msra.mxu0 %v664
        %726 = vmatpush.msra.mxu0 %v662
        %727 = vmatpush.msra.mxu0 %v660
        %728 = vmatmul.f32.gmra.mxu0 %v675
        %v729 = vpop.f32.mrf.mxu0
        %v730 = vadd.f32 0.0, %v729
        %731 = vmatmul.f32.gmra.mxu0 %v677
        %v732 = vpop.f32.mrf.mxu0
        %v733 = vadd.f32 0.0, %v732
        %734 = vmatmul.f32.gmra.mxu0 %v679
        %v735 = vpop.f32.mrf.mxu0
        %v736 = vadd.f32 0.0, %v735
        %737 = vmatmul.f32.gmra.mxu0 %v681
        %v738 = vpop.f32.mrf.mxu0
        %v739 = vadd.f32 0.0, %v738
        %740 = vdwg.mxu0
        %v741 = vadd.f32 %v618, %v701
        %v742 = vadd.f32 %v647, %v730
        %v743 = vadd.f32 %v621, %v704
        %v744 = vadd.f32 %v650, %v733
        %v745 = vadd.f32 %v624, %v707
        %v746 = vadd.f32 %v653, %v736
        %v747 = vadd.f32 %v627, %v710
        %v748 = vadd.f32 %v656, %v739
        %s749 = scalar_lea.vmem %s1, 192
        %v750 = vld [vmem:[%s749] sm:$0xff]
        %v751 = vld [vmem:[%s749 + $0x8] sm:$0xff]
        %v752 = vld [vmem:[%s749 + $0x10] sm:$0xff]
        %v753 = vld [vmem:[%s749 + $0x18] sm:$0xff]
        %v754 = vld [vmem:[%s749 + $0x20] sm:$0xff]
        %v755 = vld [vmem:[%s749 + $0x28] sm:$0xff]
        %v756 = vld [vmem:[%s749 + $0x30] sm:$0xff]
        %v757 = vld [vmem:[%s749 + $0x38] sm:$0xff]
        %vm758 = vcmask 1044480
        %v759 = vrot.slane %v492, 3
        %v760 = vrot.slane %v493, 3
        %v761 = vsel %vm758, %v759, %v760
        %v762 = vrot.slane %v494, 3
        %v763 = vsel %vm758, %v760, %v762
        %v764 = vrot.slane %v495, 3
        %v765 = vsel %vm758, %v762, %v764
        %v766 = vsel %vm525, %v761, 0
        %v768 = vsel %vm525, %v763, 0
        %v770 = vsel %vm525, %v765, 0
        %v772 = vsel %vm525, %v764, 0
        %774 = vmatpush.msra.mxu0 0.0
        %775 = vmatpush.msra.mxu0 0.0
        %776 = vmatpush.msra.mxu0 0.0
        %777 = vmatpush.msra.mxu0 0.0
        %778 = vmatpush.msra.mxu0 0.0
        %779 = vmatpush.msra.mxu0 0.0
        %780 = vmatpush.msra.mxu0 0.0
        %781 = vmatpush.msra.mxu0 0.0
        %782 = vmatpush.msra.mxu0 0.0
        %783 = vmatpush.msra.mxu0 0.0
        %784 = vmatpush.msra.mxu0 0.0
        %785 = vmatpush.msra.mxu0 0.0
        %786 = vmatpush.msra.mxu0 %v756
        %787 = vmatpush.msra.mxu0 %v754
        %788 = vmatpush.msra.mxu0 %v752
        %789 = vmatpush.msra.mxu0 %v750
        %790 = vmatmul.f32.gmra.mxu0 %v766
        %v791 = vpop.f32.mrf.mxu0
        %v792 = vadd.f32 0.0, %v791
        %793 = vmatmul.f32.gmra.mxu0 %v768
        %v794 = vpop.f32.mrf.mxu0
        %v795 = vadd.f32 0.0, %v794
        %796 = vmatmul.f32.gmra.mxu0 %v770
        %v797 = vpop.f32.mrf.mxu0
        %v798 = vadd.f32 0.0, %v797
        %799 = vmatmul.f32.gmra.mxu0 %v772
        %v800 = vpop.f32.mrf.mxu0
        %v801 = vadd.f32 0.0, %v800
        %802 = vdwg.mxu0
        %803 = vmatpush.msra.mxu0 0.0
        %804 = vmatpush.msra.mxu0 0.0
        %805 = vmatpush.msra.mxu0 0.0
        %806 = vmatpush.msra.mxu0 0.0
        %807 = vmatpush.msra.mxu0 0.0
        %808 = vmatpush.msra.mxu0 0.0
        %809 = vmatpush.msra.mxu0 0.0
        %810 = vmatpush.msra.mxu0 0.0
        %811 = vmatpush.msra.mxu0 0.0
        %812 = vmatpush.msra.mxu0 0.0
        %813 = vmatpush.msra.mxu0 0.0
        %814 = vmatpush.msra.mxu0 0.0
        %815 = vmatpush.msra.mxu0 %v757
        %816 = vmatpush.msra.mxu0 %v755
        %817 = vmatpush.msra.mxu0 %v753
        %818 = vmatpush.msra.mxu0 %v751
        %819 = vmatmul.f32.gmra.mxu0 %v766
        %v820 = vpop.f32.mrf.mxu0
        %v821 = vadd.f32 0.0, %v820
        %822 = vmatmul.f32.gmra.mxu0 %v768
        %v823 = vpop.f32.mrf.mxu0
        %v824 = vadd.f32 0.0, %v823
        %825 = vmatmul.f32.gmra.mxu0 %v770
        %v826 = vpop.f32.mrf.mxu0
        %v827 = vadd.f32 0.0, %v826
        %828 = vmatmul.f32.gmra.mxu0 %v772
        %v829 = vpop.f32.mrf.mxu0
        %v830 = vadd.f32 0.0, %v829
        %831 = vdwg.mxu0
        %v832 = vadd.f32 %v741, %v792
        %v833 = vadd.f32 %v742, %v821
        %v834 = vadd.f32 %v743, %v795
        %v835 = vadd.f32 %v744, %v824
        %v836 = vadd.f32 %v745, %v798
        %v837 = vadd.f32 %v746, %v827
        %v838 = vadd.f32 %v747, %v801
        %v839 = vadd.f32 %v748, %v830
        %s840 = scalar_lea.vmem %s1, 256
        %v841 = vld [vmem:[%s840] sm:$0xff]
        %v842 = vld [vmem:[%s840 + $0x8] sm:$0xff]
        %v843 = vld [vmem:[%s840 + $0x10] sm:$0xff]
        %v844 = vld [vmem:[%s840 + $0x18] sm:$0xff]
        %v845 = vld [vmem:[%s840 + $0x20] sm:$0xff]
        %v846 = vld [vmem:[%s840 + $0x28] sm:$0xff]
        %v847 = vld [vmem:[%s840 + $0x30] sm:$0xff]
        %v848 = vld [vmem:[%s840 + $0x38] sm:$0xff]
        %vm849 = vcmask 1043456
        %v850 = vrot.slane %v492, 4
        %v851 = vrot.slane %v493, 4
        %v852 = vsel %vm849, %v850, %v851
        %v853 = vrot.slane %v494, 4
        %v854 = vsel %vm849, %v851, %v853
        %v855 = vrot.slane %v495, 4
        %v856 = vsel %vm849, %v853, %v855
        %v857 = vsel %vm525, %v852, 0
        %v859 = vsel %vm525, %v854, 0
        %v861 = vsel %vm525, %v856, 0
        %v863 = vsel %vm525, %v855, 0
        %865 = vmatpush.msra.mxu0 0.0
        %866 = vmatpush.msra.mxu0 0.0
        %867 = vmatpush.msra.mxu0 0.0
        %868 = vmatpush.msra.mxu0 0.0
        %869 = vmatpush.msra.mxu0 0.0
        %870 = vmatpush.msra.mxu0 0.0
        %871 = vmatpush.msra.mxu0 0.0
        %872 = vmatpush.msra.mxu0 0.0
        %873 = vmatpush.msra.mxu0 0.0
        %874 = vmatpush.msra.mxu0 0.0
        %875 = vmatpush.msra.mxu0 0.0
        %876 = vmatpush.msra.mxu0 0.0
        %877 = vmatpush.msra.mxu0 %v847
        %878 = vmatpush.msra.mxu0 %v845
        %879 = vmatpush.msra.mxu0 %v843
        %880 = vmatpush.msra.mxu0 %v841
        %881 = vmatmul.f32.gmra.mxu0 %v857
        %v882 = vpop.f32.mrf.mxu0
        %v883 = vadd.f32 0.0, %v882
        %884 = vmatmul.f32.gmra.mxu0 %v859
        %v885 = vpop.f32.mrf.mxu0
        %v886 = vadd.f32 0.0, %v885
        %887 = vmatmul.f32.gmra.mxu0 %v861
        %v888 = vpop.f32.mrf.mxu0
        %v889 = vadd.f32 0.0, %v888
        %890 = vmatmul.f32.gmra.mxu0 %v863
        %v891 = vpop.f32.mrf.mxu0
        %v892 = vadd.f32 0.0, %v891
        %893 = vdwg.mxu0
        %894 = vmatpush.msra.mxu0 0.0
        %895 = vmatpush.msra.mxu0 0.0
        %896 = vmatpush.msra.mxu0 0.0
        %897 = vmatpush.msra.mxu0 0.0
        %898 = vmatpush.msra.mxu0 0.0
        %899 = vmatpush.msra.mxu0 0.0
        %900 = vmatpush.msra.mxu0 0.0
        %901 = vmatpush.msra.mxu0 0.0
        %902 = vmatpush.msra.mxu0 0.0
        %903 = vmatpush.msra.mxu0 0.0
        %904 = vmatpush.msra.mxu0 0.0
        %905 = vmatpush.msra.mxu0 0.0
        %906 = vmatpush.msra.mxu0 %v848
        %907 = vmatpush.msra.mxu0 %v846
        %908 = vmatpush.msra.mxu0 %v844
        %909 = vmatpush.msra.mxu0 %v842
        %910 = vmatmul.f32.gmra.mxu0 %v857
        %v911 = vpop.f32.mrf.mxu0
        %v912 = vadd.f32 0.0, %v911
        %913 = vmatmul.f32.gmra.mxu0 %v859
        %v914 = vpop.f32.mrf.mxu0
        %v915 = vadd.f32 0.0, %v914
        %916 = vmatmul.f32.gmra.mxu0 %v861
        %v917 = vpop.f32.mrf.mxu0
        %v918 = vadd.f32 0.0, %v917
        %919 = vmatmul.f32.gmra.mxu0 %v863
        %v920 = vpop.f32.mrf.mxu0
        %v921 = vadd.f32 0.0, %v920
        %922 = vdwg.mxu0
        %v923 = vadd.f32 %v832, %v883
        %v924 = vadd.f32 %v833, %v912
        %v925 = vadd.f32 %v834, %v886
        %v926 = vadd.f32 %v835, %v915
        %v927 = vadd.f32 %v836, %v889
        %v928 = vadd.f32 %v837, %v918
        %v929 = vadd.f32 %v838, %v892
        %v930 = vadd.f32 %v839, %v921
        %v931 = vld [vmem:[%s2] sm:$0x3]
        %v933 = vperm.slane %v931, 0
        %v934 = vperm.slane %v931, 1
        %v937 = vadd.f32 %v923, %v933
        %v938 = vadd.f32 %v924, %v934
        %v939 = vadd.f32 %v925, %v933
        %v940 = vadd.f32 %v926, %v934
        %v941 = vadd.f32 %v927, %v933
        %v942 = vadd.f32 %v928, %v934
        %v943 = vadd.f32 %v929, %v933
        %v944 = vadd.f32 %v930, %v934
        %v945 = vmax.f32 %v937, 0.0
        %v946 = vmax.f32 %v938, 0.0
        %v947 = vmax.f32 %v939, 0.0
        %v948 = vmax.f32 %v940, 0.0
        %v949 = vmax.f32 %v941, 0.0
        %v950 = vmax.f32 %v942, 0.0
        %v951 = vmax.f32 %v943, 0.0
        %v952 = vmax.f32 %v944, 0.0
        %v953 = vld [vmem:[%s3] sm:$0xff]
        %v954 = vld [vmem:[%s3 + $0x8] sm:$0x3f]
        %vm955 = vcmask 228352
        %v957 = vsel %vm955, %v953, 0
        %v960 = vsel %vm955, %v954, 0
        %v963 = vsel %vm849, %v951, 0
        %v966 = vsel %vm849, %v952, 0
        %968 = vmatpush.msra.mxu0 0.0
        %969 = vmatpush.msra.mxu0 0.0
        %970 = vmatpush.msra.mxu0 0.0
        %971 = vmatpush.msra.mxu0 0.0
        %972 = vmatpush.msra.mxu0 0.0
        %973 = vmatpush.msra.mxu0 0.0
        %974 = vmatpush.msra.mxu0 0.0
        %975 = vmatpush.msra.mxu0 0.0
        %976 = vmatpush.msra.mxu0 0.0
        %977 = vmatpush.msra.mxu0 0.0
        %978 = vmatpush.msra.mxu0 0.0
        %979 = vmatpush.msra.mxu0 0.0
        %980 = vmatpush.msra.mxu0 %v963
        %981 = vmatpush.msra.mxu0 %v949
        %982 = vmatpush.msra.mxu0 %v947
        %983 = vmatpush.msra.mxu0 %v945
        %984 = vmatmul.f32.gmra.mxu0 %v957
        %v985 = vpop.f32.mrf.mxu0
        %v986 = vadd.f32 0.0, %v985
        %987 = vmatmul.f32.gmra.mxu0 %v960
        %v988 = vpop.f32.mrf.mxu0
        %v989 = vadd.f32 0.0, %v988
        %990 = vdwg.mxu0
        %991 = vmatpush.msra.mxu0 0.0
        %992 = vmatpush.msra.mxu0 0.0
        %993 = vmatpush.msra.mxu0 0.0
        %994 = vmatpush.msra.mxu0 0.0
        %995 = vmatpush.msra.mxu0 0.0
        %996 = vmatpush.msra.mxu0 0.0
        %997 = vmatpush.msra.mxu0 0.0
        %998 = vmatpush.msra.mxu0 0.0
        %999 = vmatpush.msra.mxu0 0.0
        %1000 = vmatpush.msra.mxu0 0.0
        %1001 = vmatpush.msra.mxu0 0.0
        %1002 = vmatpush.msra.mxu0 0.0
        %1003 = vmatpush.msra.mxu0 %v966
        %1004 = vmatpush.msra.mxu0 %v950
        %1005 = vmatpush.msra.mxu0 %v948
        %1006 = vmatpush.msra.mxu0 %v946
        %1007 = vmatmul.f32.gmra.mxu0 %v957
        %v1008 = vpop.f32.mrf.mxu0
        %v1009 = vadd.f32 0.0, %v1008
        %1010 = vmatmul.f32.gmra.mxu0 %v960
        %v1011 = vpop.f32.mrf.mxu0
        %v1012 = vadd.f32 0.0, %v1011
        %1013 = vdwg.mxu0
        %s1014 = scalar_lea.vmem %s3, 16
        %v1015 = vld [vmem:[%s1014] sm:$0xff]
        %v1016 = vld [vmem:[%s1014 + $0x8] sm:$0x3f]
        %v1018 = vsel %vm955, %v1015, 0
        %v1021 = vsel %vm955, %v1016, 0
        %1023 = vmatpush.msra.mxu0 0.0
        %1024 = vmatpush.msra.mxu0 0.0
        %1025 = vmatpush.msra.mxu0 0.0
        %1026 = vmatpush.msra.mxu0 0.0
        %1027 = vmatpush.msra.mxu0 0.0
        %1028 = vmatpush.msra.mxu0 0.0
        %1029 = vmatpush.msra.mxu0 0.0
        %1030 = vmatpush.msra.mxu0 0.0
        %1031 = vmatpush.msra.mxu0 0.0
        %1032 = vmatpush.msra.mxu0 0.0
        %1033 = vmatpush.msra.mxu0 0.0
        %1034 = vmatpush.msra.mxu0 0.0
        %1035 = vmatpush.msra.mxu0 %v963
        %1036 = vmatpush.msra.mxu0 %v949
        %1037 = vmatpush.msra.mxu0 %v947
        %1038 = vmatpush.msra.mxu0 %v945
        %1039 = vmatmul.f32.gmra.mxu0 %v1018
        %v1040 = vpop.f32.mrf.mxu0
        %v1041 = vadd.f32 0.0, %v1040
        %1042 = vmatmul.f32.gmra.mxu0 %v1021
        %v1043 = vpop.f32.mrf.mxu0
        %v1044 = vadd.f32 0.0, %v1043
        %1045 = vdwg.mxu0
        %1046 = vmatpush.msra.mxu0 0.0
        %1047 = vmatpush.msra.mxu0 0.0
        %1048 = vmatpush.msra.mxu0 0.0
        %1049 = vmatpush.msra.mxu0 0.0
        %1050 = vmatpush.msra.mxu0 0.0
        %1051 = vmatpush.msra.mxu0 0.0
        %1052 = vmatpush.msra.mxu0 0.0
        %1053 = vmatpush.msra.mxu0 0.0
        %1054 = vmatpush.msra.mxu0 0.0
        %1055 = vmatpush.msra.mxu0 0.0
        %1056 = vmatpush.msra.mxu0 0.0
        %1057 = vmatpush.msra.mxu0 0.0
        %1058 = vmatpush.msra.mxu0 %v966
        %1059 = vmatpush.msra.mxu0 %v950
        %1060 = vmatpush.msra.mxu0 %v948
        %1061 = vmatpush.msra.mxu0 %v946
        %1062 = vmatmul.f32.gmra.mxu0 %v1018
        %v1063 = vpop.f32.mrf.mxu0
        %v1064 = vadd.f32 0.0, %v1063
        %1065 = vmatmul.f32.gmra.mxu0 %v1021
        %v1066 = vpop.f32.mrf.mxu0
        %v1067 = vadd.f32 0.0, %v1066
        %1068 = vdwg.mxu0
        %v1069 = vmax.f32 %v986, %v1041
        %v1070 = vmax.f32 %v1009, %v1064
        %v1071 = vmax.f32 %v989, %v1044
        %v1072 = vmax.f32 %v1012, %v1067
        %v1073 = vld [vmem:[%s4] sm:$0xff]
        %v1074 = vld [vmem:[%s4 + $0x8] sm:$0xff]
        %v1075 = vld [vmem:[%s4 + $0x10] sm:$0xff]
        %v1076 = vld [vmem:[%s4 + $0x18] sm:$0xff]
        %v1077 = vld [vmem:[%s4 + $0x20] sm:$0xff]
        %v1078 = vld [vmem:[%s4 + $0x28] sm:$0xff]
        %v1079 = vld [vmem:[%s4 + $0x30] sm:$0xff]
        %v1080 = vld [vmem:[%s4 + $0x38] sm:$0xff]
        %v1081 = vld [vmem:[%s4 + $0x40] sm:$0xff]
        %v1082 = vld [vmem:[%s4 + $0x48] sm:$0xff]
        %v1083 = vld [vmem:[%s4 + $0x50] sm:$0xff]
        %v1084 = vld [vmem:[%s4 + $0x58] sm:$0xff]
        %v1085 = vld [vmem:[%s4 + $0x60] sm:$0xff]
        %v1086 = vld [vmem:[%s4 + $0x68] sm:$0xff]
        %v1087 = vld [vmem:[%s4 + $0x70] sm:$0xff]
        %v1088 = vld [vmem:[%s4 + $0x78] sm:$0xff]
        %v1089 = vld [vmem:[%s4 + $0x80] sm:$0xff]
        %v1090 = vld [vmem:[%s4 + $0x88] sm:$0xff]
        %v1091 = vld [vmem:[%s4 + $0x90] sm:$0xff]
        %v1092 = vld [vmem:[%s4 + $0x98] sm:$0xff]
        %v1093 = vld [vmem:[%s4 + $0xa0] sm:$0xff]
        %vm1094 = vcmask 326656
        %v1096 = vsel %vm1094, %v1070, 0
        %v1099 = vsel %vm1094, %v1072, 0
        %1101 = vmatpush.msra.mxu0 %v1088
        %1102 = vmatpush.msra.mxu0 %v1087
        %1103 = vmatpush.msra.mxu0 %v1086
        %1104 = vmatpush.msra.mxu0 %v1085
        %1105 = vmatpush.msra.mxu0 %v1084
        %1106 = vmatpush.msra.mxu0 %v1083
        %1107 = vmatpush.msra.mxu0 %v1082
        %1108 = vmatpush.msra.mxu0 %v1081
        %1109 = vmatpush.msra.mxu0 %v1080
        %1110 = vmatpush.msra.mxu0 %v1079
        %1111 = vmatpush.msra.mxu0 %v1078
        %1112 = vmatpush.msra.mxu0 %v1077
        %1113 = vmatpush.msra.mxu0 %v1076
        %1114 = vmatpush.msra.mxu0 %v1075
        %1115 = vmatpush.msra.mxu0 %v1074
        %1116 = vmatpush.msra.mxu0 %v1073
        %1117 = vmatmul.f32.gmra.mxu0 %v1069
        %v1118 = vpop.f32.mrf.mxu0
        %v1119 = vadd.f32 0.0, %v1118
        %1120 = vmatmul.f32.gmra.mxu0 %v1071
        %v1121 = vpop.f32.mrf.mxu0
        %v1122 = vadd.f32 0.0, %v1121
        %1123 = vdwg.mxu0
        %1124 = vmatpush.msra.mxu0 0.0
        %1125 = vmatpush.msra.mxu0 0.0
        %1126 = vmatpush.msra.mxu0 0.0
        %1127 = vmatpush.msra.mxu0 0.0
        %1128 = vmatpush.msra.mxu0 0.0
        %1129 = vmatpush.msra.mxu0 0.0
        %1130 = vmatpush.msra.mxu0 0.0
        %1131 = vmatpush.msra.mxu0 0.0
        %1132 = vmatpush.msra.mxu0 0.0
        %1133 = vmatpush.msra.mxu0 0.0
        %1134 = vmatpush.msra.mxu0 0.0
        %1135 = vmatpush.msra.mxu0 %v1093
        %1136 = vmatpush.msra.mxu0 %v1092
        %1137 = vmatpush.msra.mxu0 %v1091
        %1138 = vmatpush.msra.mxu0 %v1090
        %1139 = vmatpush.msra.mxu0 %v1089
        %1140 = vmatmul.f32.gmra.mxu0 %v1096
        %v1141 = vpop.f32.mrf.mxu0
        %v1142 = vadd.f32 %v1119, %v1141
        %1143 = vmatmul.f32.gmra.mxu0 %v1099
        %v1144 = vpop.f32.mrf.mxu0
        %v1145 = vadd.f32 %v1122, %v1144
        %1146 = vdwg.mxu0
        %s1147 = scalar_lea.vmem %s4, 168
        %v1148 = vld [vmem:[%s1147] sm:$0xff]
        %v1149 = vld [vmem:[%s1147 + $0x8] sm:$0xff]
        %v1150 = vld [vmem:[%s1147 + $0x10] sm:$0xff]
        %v1151 = vld [vmem:[%s1147 + $0x18] sm:$0xff]
        %v1152 = vld [vmem:[%s1147 + $0x20] sm:$0xff]
        %v1153 = vld [vmem:[%s1147 + $0x28] sm:$0xff]
        %v1154 = vld [vmem:[%s1147 + $0x30] sm:$0xff]
        %v1155 = vld [vmem:[%s1147 + $0x38] sm:$0xff]
        %v1156 = vld [vmem:[%s1147 + $0x40] sm:$0xff]
        %v1157 = vld [vmem:[%s1147 + $0x48] sm:$0xff]
        %v1158 = vld [vmem:[%s1147 + $0x50] sm:$0xff]
        %v1159 = vld [vmem:[%s1147 + $0x58] sm:$0xff]
        %v1160 = vld [vmem:[%s1147 + $0x60] sm:$0xff]
        %v1161 = vld [vmem:[%s1147 + $0x68] sm:$0xff]
        %v1162 = vld [vmem:[%s1147 + $0x70] sm:$0xff]
        %v1163 = vld [vmem:[%s1147 + $0x78] sm:$0xff]
        %v1164 = vld [vmem:[%s1147 + $0x80] sm:$0xff]
        %v1165 = vld [vmem:[%s1147 + $0x88] sm:$0xff]
        %v1166 = vld [vmem:[%s1147 + $0x90] sm:$0xff]
        %v1167 = vld [vmem:[%s1147 + $0x98] sm:$0xff]
        %v1168 = vld [vmem:[%s1147 + $0xa0] sm:$0xff]
        %1169 = vmatpush.msra.mxu0 %v1163
        %1170 = vmatpush.msra.mxu0 %v1162
        %1171 = vmatpush.msra.mxu0 %v1161
        %1172 = vmatpush.msra.mxu0 %v1160
        %1173 = vmatpush.msra.mxu0 %v1159
        %1174 = vmatpush.msra.mxu0 %v1158
        %1175 = vmatpush.msra.mxu0 %v1157
        %1176 = vmatpush.msra.mxu0 %v1156
        %1177 = vmatpush.msra.mxu0 %v1155
        %1178 = vmatpush.msra.mxu0 %v1154
        %1179 = vmatpush.msra.mxu0 %v1153
        %1180 = vmatpush.msra.mxu0 %v1152
        %1181 = vmatpush.msra.mxu0 %v1151
        %1182 = vmatpush.msra.mxu0 %v1150
        %1183 = vmatpush.msra.mxu0 %v1149
        %1184 = vmatpush.msra.mxu0 %v1148
        %1185 = vmatmul.f32.gmra.mxu0 %v1069
        %v1186 = vpop.f32.mrf.mxu0
        %v1187 = vadd.f32 0.0, %v1186
        %1188 = vmatmul.f32.gmra.mxu0 %v1071
        %v1189 = vpop.f32.mrf.mxu0
        %v1190 = vadd.f32 0.0, %v1189
        %1191 = vdwg.mxu0
        %1192 = vmatpush.msra.mxu0 0.0
        %1193 = vmatpush.msra.mxu0 0.0
        %1194 = vmatpush.msra.mxu0 0.0
        %1195 = vmatpush.msra.mxu0 0.0
        %1196 = vmatpush.msra.mxu0 0.0
        %1197 = vmatpush.msra.mxu0 0.0
        %1198 = vmatpush.msra.mxu0 0.0
        %1199 = vmatpush.msra.mxu0 0.0
        %1200 = vmatpush.msra.mxu0 0.0
        %1201 = vmatpush.msra.mxu0 0.0
        %1202 = vmatpush.msra.mxu0 0.0
        %1203 = vmatpush.msra.mxu0 %v1168
        %1204 = vmatpush.msra.mxu0 %v1167
        %1205 = vmatpush.msra.mxu0 %v1166
        %1206 = vmatpush.msra.mxu0 %v1165
        %1207 = vmatpush.msra.mxu0 %v1164
        %1208 = vmatmul.f32.gmra.mxu0 %v1096
        %v1209 = vpop.f32.mrf.mxu0
        %v1210 = vadd.f32 %v1187, %v1209
        %1211 = vmatmul.f32.gmra.mxu0 %v1099
        %v1212 = vpop.f32.mrf.mxu0
        %v1213 = vadd.f32 %v1190, %v1212
        %1214 = vdwg.mxu0
        %v1215 = vmax.f32 %v1142, %v1210
        %v1216 = vmax.f32 %v1145, %v1213
        %v1217 = vld [vmem:[%s5] sm:$0xff]
        %v1218 = vld [vmem:[%s5 + $0x8] sm:$0xff]
        %v1219 = vld [vmem:[%s5 + $0x10] sm:$0xff]
        %v1220 = vld [vmem:[%s5 + $0x18] sm:$0xff]
        %v1221 = vld [vmem:[%s5 + $0x20] sm:$0xff]
        %v1222 = vld [vmem:[%s5 + $0x28] sm:$0xff]
        %v1223 = vld [vmem:[%s5 + $0x30] sm:$0xff]
        %v1224 = vld [vmem:[%s5 + $0x38] sm:$0xff]
        %v1225 = vld [vmem:[%s5 + $0x40] sm:$0xff]
        %v1226 = vld [vmem:[%s5 + $0x48] sm:$0xff]
        %v1227 = vld [vmem:[%s5 + $0x50] sm:$0xff]
        %v1228 = vld [vmem:[%s5 + $0x58] sm:$0xff]
        %v1229 = vld [vmem:[%s5 + $0x60] sm:$0xff]
        %v1230 = vld [vmem:[%s5 + $0x68] sm:$0xff]
        %v1231 = vld [vmem:[%s5 + $0x70] sm:$0xff]
        %v1232 = vld [vmem:[%s5 + $0x78] sm:$0xff]
        %v1233 = vld [vmem:[%s5 + $0x80] sm:$0xff]
        %v1234 = vld [vmem:[%s5 + $0x88] sm:$0xff]
        %v1235 = vld [vmem:[%s5 + $0x90] sm:$0xff]
        %v1236 = vld [vmem:[%s5 + $0x98] sm:$0xff]
        %v1237 = vld [vmem:[%s5 + $0xa0] sm:$0xf]
        %v1238 = vld [vmem:[%s5 + $0xa8] sm:$0xf]
        %s1239 = scalar_lea.vmem %s5, 176
        %v1240 = vld [vmem:[%s1239] sm:$0xff]
        %v1241 = vld [vmem:[%s1239 + $0x8] sm:$0xff]
        %v1242 = vld [vmem:[%s1239 + $0x10] sm:$0xff]
        %v1243 = vld [vmem:[%s1239 + $0x18] sm:$0xff]
        %v1244 = vld [vmem:[%s1239 + $0x20] sm:$0xff]
        %v1245 = vld [vmem:[%s1239 + $0x28] sm:$0xff]
        %v1246 = vld [vmem:[%s1239 + $0x30] sm:$0xff]
        %v1247 = vld [vmem:[%s1239 + $0x38] sm:$0xff]
        %v1248 = vld [vmem:[%s1239 + $0x40] sm:$0xff]
        %v1249 = vld [vmem:[%s1239 + $0x48] sm:$0xff]
        %v1250 = vld [vmem:[%s1239 + $0x50] sm:$0xff]
        %v1251 = vld [vmem:[%s1239 + $0x58] sm:$0xff]
        %v1252 = vld [vmem:[%s1239 + $0x60] sm:$0xff]
        %v1253 = vld [vmem:[%s1239 + $0x68] sm:$0xff]
        %v1254 = vld [vmem:[%s1239 + $0x70] sm:$0xff]
        %v1255 = vld [vmem:[%s1239 + $0x78] sm:$0xff]
        %v1256 = vld [vmem:[%s1239 + $0x80] sm:$0xff]
        %v1257 = vld [vmem:[%s1239 + $0x88] sm:$0xff]
        %v1258 = vld [vmem:[%s1239 + $0x90] sm:$0xff]
        %v1259 = vld [vmem:[%s1239 + $0x98] sm:$0xff]
        %v1260 = vld [vmem:[%s1239 + $0xa0] sm:$0xf]
        %v1261 = vld [vmem:[%s1239 + $0xa8] sm:$0xf]
        %v1264 = vrot.slane %v1215, 1
        %v1265 = vrot.slane %v1216, 1
        %v1266 = vsel %vm517, %v1264, %v1265
        %vm1267 = vcmask 687104
        %v1268 = vsel %vm1267, %v1266, 0
        %v1270 = vsel %vm1267, %v1265, 0
        %v1273 = vsel %vm849, %v1260, 0
        %v1276 = vsel %vm849, %v1261, 0
        %1278 = vmatpush.msra.mxu0 0.0
        %1279 = vmatpush.msra.mxu0 0.0
        %1280 = vmatpush.msra.mxu0 0.0
        %1281 = vmatpush.msra.mxu0 0.0
        %1282 = vmatpush.msra.mxu0 0.0
        %1283 = vmatpush.msra.mxu0 %v1273
        %1284 = vmatpush.msra.mxu0 %v1258
        %1285 = vmatpush.msra.mxu0 %v1256
        %1286 = vmatpush.msra.mxu0 %v1254
        %1287 = vmatpush.msra.mxu0 %v1252
        %1288 = vmatpush.msra.mxu0 %v1250
        %1289 = vmatpush.msra.mxu0 %v1248
        %1290 = vmatpush.msra.mxu0 %v1246
        %1291 = vmatpush.msra.mxu0 %v1244
        %1292 = vmatpush.msra.mxu0 %v1242
        %1293 = vmatpush.msra.mxu0 %v1240
        %1294 = vmatmul.f32.gmra.mxu0 %v1268
        %v1295 = vpop.f32.mrf.mxu0
        %v1296 = vadd.f32 0.0, %v1295
        %1297 = vmatmul.f32.gmra.mxu0 %v1270
        %v1298 = vpop.f32.mrf.mxu0
        %v1299 = vadd.f32 0.0, %v1298
        %1300 = vdwg.mxu0
        %1301 = vmatpush.msra.mxu0 0.0
        %1302 = vmatpush.msra.mxu0 0.0
        %1303 = vmatpush.msra.mxu0 0.0
        %1304 = vmatpush.msra.mxu0 0.0
        %1305 = vmatpush.msra.mxu0 0.0
        %1306 = vmatpush.msra.mxu0 %v1276
        %1307 = vmatpush.msra.mxu0 %v1259
        %1308 = vmatpush.msra.mxu0 %v1257
        %1309 = vmatpush.msra.mxu0 %v1255
        %1310 = vmatpush.msra.mxu0 %v1253
        %1311 = vmatpush.msra.mxu0 %v1251
        %1312 = vmatpush.msra.mxu0 %v1249
        %1313 = vmatpush.msra.mxu0 %v1247
        %1314 = vmatpush.msra.mxu0 %v1245
        %1315 = vmatpush.msra.mxu0 %v1243
        %1316 = vmatpush.msra.mxu0 %v1241
        %1317 = vmatmul.f32.gmra.mxu0 %v1268
        %v1318 = vpop.f32.mrf.mxu0
        %v1319 = vadd.f32 0.0, %v1318
        %1320 = vmatmul.f32.gmra.mxu0 %v1270
        %v1321 = vpop.f32.mrf.mxu0
        %v1322 = vadd.f32 0.0, %v1321
        %1323 = vdwg.mxu0
        %v1324 = vsel %vm1267, %v1215, 0
        %v1326 = vsel %vm1267, %v1216, 0
        %v1329 = vsel %vm849, %v1237, 0
        %v1332 = vsel %vm849, %v1238, 0
        %1334 = vmatpush.msra.mxu0 0.0
        %1335 = vmatpush.msra.mxu0 0.0
        %1336 = vmatpush.msra.mxu0 0.0
        %1337 = vmatpush.msra.mxu0 0.0
        %1338 = vmatpush.msra.mxu0 0.0
        %1339 = vmatpush.msra.mxu0 %v1329
        %1340 = vmatpush.msra.mxu0 %v1235
        %1341 = vmatpush.msra.mxu0 %v1233
        %1342 = vmatpush.msra.mxu0 %v1231
        %1343 = vmatpush.msra.mxu0 %v1229
        %1344 = vmatpush.msra.mxu0 %v1227
        %1345 = vmatpush.msra.mxu0 %v1225
        %1346 = vmatpush.msra.mxu0 %v1223
        %1347 = vmatpush.msra.mxu0 %v1221
        %1348 = vmatpush.msra.mxu0 %v1219
        %1349 = vmatpush.msra.mxu0 %v1217
        %1350 = vmatmul.f32.gmra.mxu0 %v1324
        %v1351 = vpop.f32.mrf.mxu0
        %v1352 = vadd.f32 %v1296, %v1351
        %1353 = vmatmul.f32.gmra.mxu0 %v1326
        %v1354 = vpop.f32.mrf.mxu0
        %v1355 = vadd.f32 %v1299, %v1354
        %1356 = vdwg.mxu0
        %1357 = vmatpush.msra.mxu0 0.0
        %1358 = vmatpush.msra.mxu0 0.0
        %1359 = vmatpush.msra.mxu0 0.0
        %1360 = vmatpush.msra.mxu0 0.0
        %1361 = vmatpush.msra.mxu0 0.0
        %1362 = vmatpush.msra.mxu0 %v1332
        %1363 = vmatpush.msra.mxu0 %v1236
        %1364 = vmatpush.msra.mxu0 %v1234
        %1365 = vmatpush.msra.mxu0 %v1232
        %1366 = vmatpush.msra.mxu0 %v1230
        %1367 = vmatpush.msra.mxu0 %v1228
        %1368 = vmatpush.msra.mxu0 %v1226
        %1369 = vmatpush.msra.mxu0 %v1224
        %1370 = vmatpush.msra.mxu0 %v1222
        %1371 = vmatpush.msra.mxu0 %v1220
        %1372 = vmatpush.msra.mxu0 %v1218
        %1373 = vmatmul.f32.gmra.mxu0 %v1324
        %v1374 = vpop.f32.mrf.mxu0
        %v1375 = vadd.f32 %v1319, %v1374
        %1376 = vmatmul.f32.gmra.mxu0 %v1326
        %v1377 = vpop.f32.mrf.mxu0
        %v1378 = vadd.f32 %v1322, %v1377
        %1379 = vdwg.mxu0
        %s1380 = scalar_lea.vmem %s5, 352
        %v1381 = vld [vmem:[%s1380] sm:$0xff]
        %v1382 = vld [vmem:[%s1380 + $0x8] sm:$0xff]
        %v1383 = vld [vmem:[%s1380 + $0x10] sm:$0xff]
        %v1384 = vld [vmem:[%s1380 + $0x18] sm:$0xff]
        %v1385 = vld [vmem:[%s1380 + $0x20] sm:$0xff]
        %v1386 = vld [vmem:[%s1380 + $0x28] sm:$0xff]
        %v1387 = vld [vmem:[%s1380 + $0x30] sm:$0xff]
        %v1388 = vld [vmem:[%s1380 + $0x38] sm:$0xff]
        %v1389 = vld [vmem:[%s1380 + $0x40] sm:$0xff]
        %v1390 = vld [vmem:[%s1380 + $0x48] sm:$0xff]
        %v1391 = vld [vmem:[%s1380 + $0x50] sm:$0xff]
        %v1392 = vld [vmem:[%s1380 + $0x58] sm:$0xff]
        %v1393 = vld [vmem:[%s1380 + $0x60] sm:$0xff]
        %v1394 = vld [vmem:[%s1380 + $0x68] sm:$0xff]
        %v1395 = vld [vmem:[%s1380 + $0x70] sm:$0xff]
        %v1396 = vld [vmem:[%s1380 + $0x78] sm:$0xff]
        %v1397 = vld [vmem:[%s1380 + $0x80] sm:$0xff]
        %v1398 = vld [vmem:[%s1380 + $0x88] sm:$0xff]
        %v1399 = vld [vmem:[%s1380 + $0x90] sm:$0xff]
        %v1400 = vld [vmem:[%s1380 + $0x98] sm:$0xff]
        %v1401 = vld [vmem:[%s1380 + $0xa0] sm:$0xf]
        %v1402 = vld [vmem:[%s1380 + $0xa8] sm:$0xf]
        %v1403 = vrot.slane %v1215, 2
        %v1404 = vrot.slane %v1216, 2
        %v1405 = vsel %vm667, %v1403, %v1404
        %v1406 = vsel %vm1267, %v1405, 0
        %v1408 = vsel %vm1267, %v1404, 0
        %v1411 = vsel %vm849, %v1401, 0
        %v1414 = vsel %vm849, %v1402, 0
        %1416 = vmatpush.msra.mxu0 0.0
        %1417 = vmatpush.msra.mxu0 0.0
        %1418 = vmatpush.msra.mxu0 0.0
        %1419 = vmatpush.msra.mxu0 0.0
        %1420 = vmatpush.msra.mxu0 0.0
        %1421 = vmatpush.msra.mxu0 %v1411
        %1422 = vmatpush.msra.mxu0 %v1399
        %1423 = vmatpush.msra.mxu0 %v1397
        %1424 = vmatpush.msra.mxu0 %v1395
        %1425 = vmatpush.msra.mxu0 %v1393
        %1426 = vmatpush.msra.mxu0 %v1391
        %1427 = vmatpush.msra.mxu0 %v1389
        %1428 = vmatpush.msra.mxu0 %v1387
        %1429 = vmatpush.msra.mxu0 %v1385
        %1430 = vmatpush.msra.mxu0 %v1383
        %1431 = vmatpush.msra.mxu0 %v1381
        %1432 = vmatmul.f32.gmra.mxu0 %v1406
        %v1433 = vpop.f32.mrf.mxu0
        %v1434 = vadd.f32 0.0, %v1433
        %1435 = vmatmul.f32.gmra.mxu0 %v1408
        %v1436 = vpop.f32.mrf.mxu0
        %v1437 = vadd.f32 0.0, %v1436
        %1438 = vdwg.mxu0
        %1439 = vmatpush.msra.mxu0 0.0
        %1440 = vmatpush.msra.mxu0 0.0
        %1441 = vmatpush.msra.mxu0 0.0
        %1442 = vmatpush.msra.mxu0 0.0
        %1443 = vmatpush.msra.mxu0 0.0
        %1444 = vmatpush.msra.mxu0 %v1414
        %1445 = vmatpush.msra.mxu0 %v1400
        %1446 = vmatpush.msra.mxu0 %v1398
        %1447 = vmatpush.msra.mxu0 %v1396
        %1448 = vmatpush.msra.mxu0 %v1394
        %1449 = vmatpush.msra.mxu0 %v1392
        %1450 = vmatpush.msra.mxu0 %v1390
        %1451 = vmatpush.msra.mxu0 %v1388
        %1452 = vmatpush.msra.mxu0 %v1386
        %1453 = vmatpush.msra.mxu0 %v1384
        %1454 = vmatpush.msra.mxu0 %v1382
        %1455 = vmatmul.f32.gmra.mxu0 %v1406
        %v1456 = vpop.f32.mrf.mxu0
        %v1457 = vadd.f32 0.0, %v1456
        %1458 = vmatmul.f32.gmra.mxu0 %v1408
        %v1459 = vpop.f32.mrf.mxu0
        %v1460 = vadd.f32 0.0, %v1459
        %1461 = vdwg.mxu0
        %v1462 = vadd.f32 %v1352, %v1434
        %v1463 = vadd.f32 %v1375, %v1457
        %v1464 = vadd.f32 %v1355, %v1437
        %v1465 = vadd.f32 %v1378, %v1460
        %s1466 = scalar_lea.vmem %s5, 528
        %v1467 = vld [vmem:[%s1466] sm:$0xff]
        %v1468 = vld [vmem:[%s1466 + $0x8] sm:$0xff]
        %v1469 = vld [vmem:[%s1466 + $0x10] sm:$0xff]
        %v1470 = vld [vmem:[%s1466 + $0x18] sm:$0xff]
        %v1471 = vld [vmem:[%s1466 + $0x20] sm:$0xff]
        %v1472 = vld [vmem:[%s1466 + $0x28] sm:$0xff]
        %v1473 = vld [vmem:[%s1466 + $0x30] sm:$0xff]
        %v1474 = vld [vmem:[%s1466 + $0x38] sm:$0xff]
        %v1475 = vld [vmem:[%s1466 + $0x40] sm:$0xff]
        %v1476 = vld [vmem:[%s1466 + $0x48] sm:$0xff]
        %v1477 = vld [vmem:[%s1466 + $0x50] sm:$0xff]
        %v1478 = vld [vmem:[%s1466 + $0x58] sm:$0xff]
        %v1479 = vld [vmem:[%s1466 + $0x60] sm:$0xff]
        %v1480 = vld [vmem:[%s1466 + $0x68] sm:$0xff]
        %v1481 = vld [vmem:[%s1466 + $0x70] sm:$0xff]
        %v1482 = vld [vmem:[%s1466 + $0x78] sm:$0xff]
        %v1483 = vld [vmem:[%s1466 + $0x80] sm:$0xff]
        %v1484 = vld [vmem:[%s1466 + $0x88] sm:$0xff]
        %v1485 = vld [vmem:[%s1466 + $0x90] sm:$0xff]
        %v1486 = vld [vmem:[%s1466 + $0x98] sm:$0xff]
        %v1487 = vld [vmem:[%s1466 + $0xa0] sm:$0xf]
        %v1488 = vld [vmem:[%s1466 + $0xa8] sm:$0xf]
        %v1489 = vrot.slane %v1215, 3
        %v1490 = vrot.slane %v1216, 3
        %v1491 = vsel %vm758, %v1489, %v1490
        %v1492 = vsel %vm1267, %v1491, 0
        %v1494 = vsel %vm1267, %v1490, 0
        %v1497 = vsel %vm849, %v1487, 0
        %v1500 = vsel %vm849, %v1488, 0
        %1502 = vmatpush.msra.mxu0 0.0
        %1503 = vmatpush.msra.mxu0 0.0
        %1504 = vmatpush.msra.mxu0 0.0
        %1505 = vmatpush.msra.mxu0 0.0
        %1506 = vmatpush.msra.mxu0 0.0
        %1507 = vmatpush.msra.mxu0 %v1497
        %1508 = vmatpush.msra.mxu0 %v1485
        %1509 = vmatpush.msra.mxu0 %v1483
        %1510 = vmatpush.msra.mxu0 %v1481
        %1511 = vmatpush.msra.mxu0 %v1479
        %1512 = vmatpush.msra.mxu0 %v1477
        %1513 = vmatpush.msra.mxu0 %v1475
        %1514 = vmatpush.msra.mxu0 %v1473
        %1515 = vmatpush.msra.mxu0 %v1471
        %1516 = vmatpush.msra.mxu0 %v1469
        %1517 = vmatpush.msra.mxu0 %v1467
        %1518 = vmatmul.f32.gmra.mxu0 %v1492
        %v1519 = vpop.f32.mrf.mxu0
        %v1520 = vadd.f32 0.0, %v1519
        %1521 = vmatmul.f32.gmra.mxu0 %v1494
        %v1522 = vpop.f32.mrf.mxu0
        %v1523 = vadd.f32 0.0, %v1522
        %1524 = vdwg.mxu0
        %1525 = vmatpush.msra.mxu0 0.0
        %1526 = vmatpush.msra.mxu0 0.0
        %1527 = vmatpush.msra.mxu0 0.0
        %1528 = vmatpush.msra.mxu0 0.0
        %1529 = vmatpush.msra.mxu0 0.0
        %1530 = vmatpush.msra.mxu0 %v1500
        %1531 = vmatpush.msra.mxu0 %v1486
        %1532 = vmatpush.msra.mxu0 %v1484
        %1533 = vmatpush.msra.mxu0 %v1482
        %1534 = vmatpush.msra.mxu0 %v1480
        %1535 = vmatpush.msra.mxu0 %v1478
        %1536 = vmatpush.msra.mxu0 %v1476
        %1537 = vmatpush.msra.mxu0 %v1474
        %1538 = vmatpush.msra.mxu0 %v1472
        %1539 = vmatpush.msra.mxu0 %v1470
        %1540 = vmatpush.msra.mxu0 %v1468
        %1541 = vmatmul.f32.gmra.mxu0 %v1492
        %v1542 = vpop.f32.mrf.mxu0
        %v1543 = vadd.f32 0.0, %v1542
        %1544 = vmatmul.f32.gmra.mxu0 %v1494
        %v1545 = vpop.f32.mrf.mxu0
        %v1546 = vadd.f32 0.0, %v1545
        %1547 = vdwg.mxu0
        %v1548 = vadd.f32 %v1462, %v1520
        %v1549 = vadd.f32 %v1463, %v1543
        %v1550 = vadd.f32 %v1464, %v1523
        %v1551 = vadd.f32 %v1465, %v1546
        %s1552 = scalar_lea.vmem %s5, 704
        %v1553 = vld [vmem:[%s1552] sm:$0xff]
        %v1554 = vld [vmem:[%s1552 + $0x8] sm:$0xff]
        %v1555 = vld [vmem:[%s1552 + $0x10] sm:$0xff]
        %v1556 = vld [vmem:[%s1552 + $0x18] sm:$0xff]
        %v1557 = vld [vmem:[%s1552 + $0x20] sm:$0xff]
        %v1558 = vld [vmem:[%s1552 + $0x28] sm:$0xff]
        %v1559 = vld [vmem:[%s1552 + $0x30] sm:$0xff]
        %v1560 = vld [vmem:[%s1552 + $0x38] sm:$0xff]
        %v1561 = vld [vmem:[%s1552 + $0x40] sm:$0xff]
        %v1562 = vld [vmem:[%s1552 + $0x48] sm:$0xff]
        %v1563 = vld [vmem:[%s1552 + $0x50] sm:$0xff]
        %v1564 = vld [vmem:[%s1552 + $0x58] sm:$0xff]
        %v1565 = vld [vmem:[%s1552 + $0x60] sm:$0xff]
        %v1566 = vld [vmem:[%s1552 + $0x68] sm:$0xff]
        %v1567 = vld [vmem:[%s1552 + $0x70] sm:$0xff]
        %v1568 = vld [vmem:[%s1552 + $0x78] sm:$0xff]
        %v1569 = vld [vmem:[%s1552 + $0x80] sm:$0xff]
        %v1570 = vld [vmem:[%s1552 + $0x88] sm:$0xff]
        %v1571 = vld [vmem:[%s1552 + $0x90] sm:$0xff]
        %v1572 = vld [vmem:[%s1552 + $0x98] sm:$0xff]
        %v1573 = vld [vmem:[%s1552 + $0xa0] sm:$0xf]
        %v1574 = vld [vmem:[%s1552 + $0xa8] sm:$0xf]
        %v1575 = vrot.slane %v1215, 4
        %v1576 = vrot.slane %v1216, 4
        %v1577 = vsel %vm849, %v1575, %v1576
        %v1578 = vsel %vm1267, %v1577, 0
        %v1580 = vsel %vm1267, %v1576, 0
        %v1583 = vsel %vm849, %v1573, 0
        %v1586 = vsel %vm849, %v1574, 0
        %1588 = vmatpush.msra.mxu0 0.0
        %1589 = vmatpush.msra.mxu0 0.0
        %1590 = vmatpush.msra.mxu0 0.0
        %1591 = vmatpush.msra.mxu0 0.0
        %1592 = vmatpush.msra.mxu0 0.0
        %1593 = vmatpush.msra.mxu0 %v1583
        %1594 = vmatpush.msra.mxu0 %v1571
        %1595 = vmatpush.msra.mxu0 %v1569
        %1596 = vmatpush.msra.mxu0 %v1567
        %1597 = vmatpush.msra.mxu0 %v1565
        %1598 = vmatpush.msra.mxu0 %v1563
        %1599 = vmatpush.msra.mxu0 %v1561
        %1600 = vmatpush.msra.mxu0 %v1559
        %1601 = vmatpush.msra.mxu0 %v1557
        %1602 = vmatpush.msra.mxu0 %v1555
        %1603 = vmatpush.msra.mxu0 %v1553
        %1604 = vmatmul.f32.gmra.mxu0 %v1578
        %v1605 = vpop.f32.mrf.mxu0
        %v1606 = vadd.f32 0.0, %v1605
        %1607 = vmatmul.f32.gmra.mxu0 %v1580
        %v1608 = vpop.f32.mrf.mxu0
        %v1609 = vadd.f32 0.0, %v1608
        %1610 = vdwg.mxu0
        %1611 = vmatpush.msra.mxu0 0.0
        %1612 = vmatpush.msra.mxu0 0.0
        %1613 = vmatpush.msra.mxu0 0.0
        %1614 = vmatpush.msra.mxu0 0.0
        %1615 = vmatpush.msra.mxu0 0.0
        %1616 = vmatpush.msra.mxu0 %v1586
        %1617 = vmatpush.msra.mxu0 %v1572
        %1618 = vmatpush.msra.mxu0 %v1570
        %1619 = vmatpush.msra.mxu0 %v1568
        %1620 = vmatpush.msra.mxu0 %v1566
        %1621 = vmatpush.msra.mxu0 %v1564
        %1622 = vmatpush.msra.mxu0 %v1562
        %1623 = vmatpush.msra.mxu0 %v1560
        %1624 = vmatpush.msra.mxu0 %v1558
        %1625 = vmatpush.msra.mxu0 %v1556
        %1626 = vmatpush.msra.mxu0 %v1554
        %1627 = vmatmul.f32.gmra.mxu0 %v1578
        %v1628 = vpop.f32.mrf.mxu0
        %v1629 = vadd.f32 0.0, %v1628
        %1630 = vmatmul.f32.gmra.mxu0 %v1580
        %v1631 = vpop.f32.mrf.mxu0
        %v1632 = vadd.f32 0.0, %v1631
        %1633 = vdwg.mxu0
        %v1634 = vadd.f32 %v1548, %v1606
        %v1635 = vadd.f32 %v1549, %v1629
        %v1636 = vadd.f32 %v1550, %v1609
        %v1637 = vadd.f32 %v1551, %v1632
        %v1638 = vld [vmem:[%s6] sm:$0x3]
        %v1640 = vperm.slane %v1638, 0
        %v1641 = vperm.slane %v1638, 1
        %v1644 = vadd.f32 %v1634, %v1640
        %v1645 = vadd.f32 %v1635, %v1641
        %v1646 = vadd.f32 %v1636, %v1640
        %v1647 = vadd.f32 %v1637, %v1641
        %v1648 = vmax.f32 %v1644, 0.0
        %v1649 = vmax.f32 %v1645, 0.0
        %v1650 = vmax.f32 %v1646, 0.0
        %v1651 = vmax.f32 %v1647, 0.0
        %v1652 = vld [vmem:[%s7] sm:$0x1f]
        %vm1653 = vcmask 80896
        %v1655 = vsel %vm1653, %v1652, 0
        %vm1657 = vcmask 1041408
        %v1659 = vsel %vm1657, %v1650, 0
        %v1662 = vsel %vm1657, %v1651, 0
        %1664 = vmatpush.msra.mxu0 0.0
        %1665 = vmatpush.msra.mxu0 0.0
        %1666 = vmatpush.msra.mxu0 0.0
        %1667 = vmatpush.msra.mxu0 0.0
        %1668 = vmatpush.msra.mxu0 0.0
        %1669 = vmatpush.msra.mxu0 0.0
        %1670 = vmatpush.msra.mxu0 0.0
        %1671 = vmatpush.msra.mxu0 0.0
        %1672 = vmatpush.msra.mxu0 0.0
        %1673 = vmatpush.msra.mxu0 0.0
        %1674 = vmatpush.msra.mxu0 0.0
        %1675 = vmatpush.msra.mxu0 0.0
        %1676 = vmatpush.msra.mxu0 0.0
        %1677 = vmatpush.msra.mxu0 0.0
        %1678 = vmatpush.msra.mxu0 %v1659
        %1679 = vmatpush.msra.mxu0 %v1648
        %1680 = vmatmul.f32.gmra.mxu0 %v1655
        %v1681 = vpop.f32.mrf.mxu0
        %v1682 = vadd.f32 0.0, %v1681
        %1683 = vdwg.mxu0
        %1684 = vmatpush.msra.mxu0 0.0
        %1685 = vmatpush.msra.mxu0 0.0
        %1686 = vmatpush.msra.mxu0 0.0
        %1687 = vmatpush.msra.mxu0 0.0
        %1688 = vmatpush.msra.mxu0 0.0
        %1689 = vmatpush.msra.mxu0 0.0
        %1690 = vmatpush.msra.mxu0 0.0
        %1691 = vmatpush.msra.mxu0 0.0
        %1692 = vmatpush.msra.mxu0 0.0
        %1693 = vmatpush.msra.mxu0 0.0
        %1694 = vmatpush.msra.mxu0 0.0
        %1695 = vmatpush.msra.mxu0 0.0
        %1696 = vmatpush.msra.mxu0 0.0
        %1697 = vmatpush.msra.mxu0 0.0
        %1698 = vmatpush.msra.mxu0 %v1662
        %1699 = vmatpush.msra.mxu0 %v1649
        %1700 = vmatmul.f32.gmra.mxu0 %v1655
        %v1701 = vpop.f32.mrf.mxu0
        %v1702 = vadd.f32 0.0, %v1701
        %1703 = vdwg.mxu0
        %s1704 = scalar_lea.vmem %s7, 8
        %v1705 = vld [vmem:[%s1704] sm:$0x1f]
        %v1707 = vsel %vm1653, %v1705, 0
        %1709 = vmatpush.msra.mxu0 0.0
        %1710 = vmatpush.msra.mxu0 0.0
        %1711 = vmatpush.msra.mxu0 0.0
        %1712 = vmatpush.msra.mxu0 0.0
        %1713 = vmatpush.msra.mxu0 0.0
        %1714 = vmatpush.msra.mxu0 0.0
        %1715 = vmatpush.msra.mxu0 0.0
        %1716 = vmatpush.msra.mxu0 0.0
        %1717 = vmatpush.msra.mxu0 0.0
        %1718 = vmatpush.msra.mxu0 0.0
        %1719 = vmatpush.msra.mxu0 0.0
        %1720 = vmatpush.msra.mxu0 0.0
        %1721 = vmatpush.msra.mxu0 0.0
        %1722 = vmatpush.msra.mxu0 0.0
        %1723 = vmatpush.msra.mxu0 %v1659
        %1724 = vmatpush.msra.mxu0 %v1648
        %1725 = vmatmul.f32.gmra.mxu0 %v1707
        %v1726 = vpop.f32.mrf.mxu0
        %v1727 = vadd.f32 0.0, %v1726
        %1728 = vdwg.mxu0
        %1729 = vmatpush.msra.mxu0 0.0
        %1730 = vmatpush.msra.mxu0 0.0
        %1731 = vmatpush.msra.mxu0 0.0
        %1732 = vmatpush.msra.mxu0 0.0
        %1733 = vmatpush.msra.mxu0 0.0
        %1734 = vmatpush.msra.mxu0 0.0
        %1735 = vmatpush.msra.mxu0 0.0
        %1736 = vmatpush.msra.mxu0 0.0
        %1737 = vmatpush.msra.mxu0 0.0
        %1738 = vmatpush.msra.mxu0 0.0
        %1739 = vmatpush.msra.mxu0 0.0
        %1740 = vmatpush.msra.mxu0 0.0
        %1741 = vmatpush.msra.mxu0 0.0
        %1742 = vmatpush.msra.mxu0 0.0
        %1743 = vmatpush.msra.mxu0 %v1662
        %1744 = vmatpush.msra.mxu0 %v1649
        %1745 = vmatmul.f32.gmra.mxu0 %v1707
        %v1746 = vpop.f32.mrf.mxu0
        %v1747 = vadd.f32 0.0, %v1746
        %1748 = vdwg.mxu0
        %v1749 = vmax.f32 %v1682, %v1727
        %v1750 = vmax.f32 %v1702, %v1747
        %v1751 = vld [vmem:[%s8] sm:$0xff]
        %v1752 = vld [vmem:[%s8 + $0x8] sm:$0xff]
        %v1753 = vld [vmem:[%s8 + $0x10] sm:$0xff]
        %v1754 = vld [vmem:[%s8 + $0x18] sm:$0xff]
        %v1755 = vld [vmem:[%s8 + $0x20] sm:$0xff]
        %v1756 = vld [vmem:[%s8 + $0x28] sm:$0xff]
        %v1757 = vld [vmem:[%s8 + $0x30] sm:$0xff]
        %v1758 = vld [vmem:[%s8 + $0x38] sm:$0xff]
        %v1759 = vld [vmem:[%s8 + $0x40] sm:$0xff]
        %v1760 = vld [vmem:[%s8 + $0x48] sm:$0xff]
        %v1761 = vld [vmem:[%s8 + $0x50] sm:$0xff]
        %v1762 = vld [vmem:[%s8 + $0x58] sm:$0xff]
        %v1763 = vld [vmem:[%s8 + $0x60] sm:$0xff]
        %v1764 = vld [vmem:[%s8 + $0x68] sm:$0xff]
        %v1765 = vld [vmem:[%s8 + $0x70] sm:$0xff]
        %v1766 = vld [vmem:[%s8 + $0x78] sm:$0xff]
        %v1767 = vld [vmem:[%s8 + $0x80] sm:$0xff]
        %v1768 = vld [vmem:[%s8 + $0x88] sm:$0xff]
        %v1769 = vld [vmem:[%s8 + $0x90] sm:$0xff]
        %v1770 = vld [vmem:[%s8 + $0x98] sm:$0xff]
        %v1772 = vsel %vm525, %v1750, 0
        %1774 = vmatpush.msra.mxu0 %v1766
        %1775 = vmatpush.msra.mxu0 %v1765
        %1776 = vmatpush.msra.mxu0 %v1764
        %1777 = vmatpush.msra.mxu0 %v1763
        %1778 = vmatpush.msra.mxu0 %v1762
        %1779 = vmatpush.msra.mxu0 %v1761
        %1780 = vmatpush.msra.mxu0 %v1760
        %1781 = vmatpush.msra.mxu0 %v1759
        %1782 = vmatpush.msra.mxu0 %v1758
        %1783 = vmatpush.msra.mxu0 %v1757
        %1784 = vmatpush.msra.mxu0 %v1756
        %1785 = vmatpush.msra.mxu0 %v1755
        %1786 = vmatpush.msra.mxu0 %v1754
        %1787 = vmatpush.msra.mxu0 %v1753
        %1788 = vmatpush.msra.mxu0 %v1752
        %1789 = vmatpush.msra.mxu0 %v1751
        %1790 = vmatmul.f32.gmra.mxu0 %v1749
        %v1791 = vpop.f32.mrf.mxu0
        %v1792 = vadd.f32 0.0, %v1791
        %1793 = vdwg.mxu0
        %1794 = vmatpush.msra.mxu0 0.0
        %1795 = vmatpush.msra.mxu0 0.0
        %1796 = vmatpush.msra.mxu0 0.0
        %1797 = vmatpush.msra.mxu0 0.0
        %1798 = vmatpush.msra.mxu0 0.0
        %1799 = vmatpush.msra.mxu0 0.0
        %1800 = vmatpush.msra.mxu0 0.0
        %1801 = vmatpush.msra.mxu0 0.0
        %1802 = vmatpush.msra.mxu0 0.0
        %1803 = vmatpush.msra.mxu0 0.0
        %1804 = vmatpush.msra.mxu0 0.0
        %1805 = vmatpush.msra.mxu0 0.0
        %1806 = vmatpush.msra.mxu0 %v1770
        %1807 = vmatpush.msra.mxu0 %v1769
        %1808 = vmatpush.msra.mxu0 %v1768
        %1809 = vmatpush.msra.mxu0 %v1767
        %1810 = vmatmul.f32.gmra.mxu0 %v1772
        %v1811 = vpop.f32.mrf.mxu0
        %v1812 = vadd.f32 %v1792, %v1811
        %1813 = vdwg.mxu0
        %s1814 = scalar_lea.vmem %s8, 160
        %v1815 = vld [vmem:[%s1814] sm:$0xff]
        %v1816 = vld [vmem:[%s1814 + $0x8] sm:$0xff]
        %v1817 = vld [vmem:[%s1814 + $0x10] sm:$0xff]
        %v1818 = vld [vmem:[%s1814 + $0x18] sm:$0xff]
        %v1819 = vld [vmem:[%s1814 + $0x20] sm:$0xff]
        %v1820 = vld [vmem:[%s1814 + $0x28] sm:$0xff]
        %v1821 = vld [vmem:[%s1814 + $0x30] sm:$0xff]
        %v1822 = vld [vmem:[%s1814 + $0x38] sm:$0xff]
        %v1823 = vld [vmem:[%s1814 + $0x40] sm:$0xff]
        %v1824 = vld [vmem:[%s1814 + $0x48] sm:$0xff]
        %v1825 = vld [vmem:[%s1814 + $0x50] sm:$0xff]
        %v1826 = vld [vmem:[%s1814 + $0x58] sm:$0xff]
        %v1827 = vld [vmem:[%s1814 + $0x60] sm:$0xff]
        %v1828 = vld [vmem:[%s1814 + $0x68] sm:$0xff]
        %v1829 = vld [vmem:[%s1814 + $0x70] sm:$0xff]
        %v1830 = vld [vmem:[%s1814 + $0x78] sm:$0xff]
        %v1831 = vld [vmem:[%s1814 + $0x80] sm:$0xff]
        %v1832 = vld [vmem:[%s1814 + $0x88] sm:$0xff]
        %v1833 = vld [vmem:[%s1814 + $0x90] sm:$0xff]
        %v1834 = vld [vmem:[%s1814 + $0x98] sm:$0xff]
        %1835 = vmatpush.msra.mxu0 %v1830
        %1836 = vmatpush.msra.mxu0 %v1829
        %1837 = vmatpush.msra.mxu0 %v1828
        %1838 = vmatpush.msra.mxu0 %v1827
        %1839 = vmatpush.msra.mxu0 %v1826
        %1840 = vmatpush.msra.mxu0 %v1825
        %1841 = vmatpush.msra.mxu0 %v1824
        %1842 = vmatpush.msra.mxu0 %v1823
        %1843 = vmatpush.msra.mxu0 %v1822
        %1844 = vmatpush.msra.mxu0 %v1821
        %1845 = vmatpush.msra.mxu0 %v1820
        %1846 = vmatpush.msra.mxu0 %v1819
        %1847 = vmatpush.msra.mxu0 %v1818
        %1848 = vmatpush.msra.mxu0 %v1817
        %1849 = vmatpush.msra.mxu0 %v1816
        %1850 = vmatpush.msra.mxu0 %v1815
        %1851 = vmatmul.f32.gmra.mxu0 %v1749
        %v1852 = vpop.f32.mrf.mxu0
        %v1853 = vadd.f32 0.0, %v1852
        %1854 = vdwg.mxu0
        %1855 = vmatpush.msra.mxu0 0.0
        %1856 = vmatpush.msra.mxu0 0.0
        %1857 = vmatpush.msra.mxu0 0.0
        %1858 = vmatpush.msra.mxu0 0.0
        %1859 = vmatpush.msra.mxu0 0.0
        %1860 = vmatpush.msra.mxu0 0.0
        %1861 = vmatpush.msra.mxu0 0.0
        %1862 = vmatpush.msra.mxu0 0.0
        %1863 = vmatpush.msra.mxu0 0.0
        %1864 = vmatpush.msra.mxu0 0.0
        %1865 = vmatpush.msra.mxu0 0.0
        %1866 = vmatpush.msra.mxu0 0.0
        %1867 = vmatpush.msra.mxu0 %v1834
        %1868 = vmatpush.msra.mxu0 %v1833
        %1869 = vmatpush.msra.mxu0 %v1832
        %1870 = vmatpush.msra.mxu0 %v1831
        %1871 = vmatmul.f32.gmra.mxu0 %v1772
        %v1872 = vpop.f32.mrf.mxu0
        %v1873 = vadd.f32 %v1853, %v1872
        %1874 = vdwg.mxu0
        %v1875 = vmax.f32 %v1812, %v1873
        %v1876 = vld [vmem:[%s9] sm:$0xff]
        %v1877 = vld [vmem:[%s9 + $0x8] sm:$0xff]
        %v1878 = vld [vmem:[%s9 + $0x10] sm:$0xff]
        %v1879 = vld [vmem:[%s9 + $0x18] sm:$0xff]
        %v1880 = vld [vmem:[%s9 + $0x20] sm:$0xff]
        %v1881 = vld [vmem:[%s9 + $0x28] sm:$0xff]
        %v1882 = vld [vmem:[%s9 + $0x30] sm:$0xff]
        %v1883 = vld [vmem:[%s9 + $0x38] sm:$0xff]
        %v1884 = vld [vmem:[%s9 + $0x40] sm:$0xff]
        %v1885 = vld [vmem:[%s9 + $0x48] sm:$0xff]
        %s1886 = scalar_lea.vmem %s9, 80
        %v1887 = vld [vmem:[%s1886] sm:$0xff]
        %v1888 = vld [vmem:[%s1886 + $0x8] sm:$0xff]
        %v1889 = vld [vmem:[%s1886 + $0x10] sm:$0xff]
        %v1890 = vld [vmem:[%s1886 + $0x18] sm:$0xff]
        %v1891 = vld [vmem:[%s1886 + $0x20] sm:$0xff]
        %v1892 = vld [vmem:[%s1886 + $0x28] sm:$0xff]
        %v1893 = vld [vmem:[%s1886 + $0x30] sm:$0xff]
        %v1894 = vld [vmem:[%s1886 + $0x38] sm:$0xff]
        %v1895 = vld [vmem:[%s1886 + $0x40] sm:$0xff]
        %v1896 = vld [vmem:[%s1886 + $0x48] sm:$0xff]
        %v1898 = vrot.slane %v1875, 1
        %vm1899 = vcmask 654336
        %v1900 = vsel %vm1899, %v1898, 0
        %1902 = vmatpush.msra.mxu0 0.0
        %1903 = vmatpush.msra.mxu0 0.0
        %1904 = vmatpush.msra.mxu0 0.0
        %1905 = vmatpush.msra.mxu0 0.0
        %1906 = vmatpush.msra.mxu0 0.0
        %1907 = vmatpush.msra.mxu0 0.0
        %1908 = vmatpush.msra.mxu0 %v1896
        %1909 = vmatpush.msra.mxu0 %v1895
        %1910 = vmatpush.msra.mxu0 %v1894
        %1911 = vmatpush.msra.mxu0 %v1893
        %1912 = vmatpush.msra.mxu0 %v1892
        %1913 = vmatpush.msra.mxu0 %v1891
        %1914 = vmatpush.msra.mxu0 %v1890
        %1915 = vmatpush.msra.mxu0 %v1889
        %1916 = vmatpush.msra.mxu0 %v1888
        %1917 = vmatpush.msra.mxu0 %v1887
        %1918 = vmatmul.f32.gmra.mxu0 %v1900
        %v1919 = vpop.f32.mrf.mxu0
        %v1920 = vadd.f32 0.0, %v1919
        %1921 = vdwg.mxu0
        %v1922 = vsel %vm1899, %v1875, 0
        %1924 = vmatpush.msra.mxu0 0.0
        %1925 = vmatpush.msra.mxu0 0.0
        %1926 = vmatpush.msra.mxu0 0.0
        %1927 = vmatpush.msra.mxu0 0.0
        %1928 = vmatpush.msra.mxu0 0.0
        %1929 = vmatpush.msra.mxu0 0.0
        %1930 = vmatpush.msra.mxu0 %v1885
        %1931 = vmatpush.msra.mxu0 %v1884
        %1932 = vmatpush.msra.mxu0 %v1883
        %1933 = vmatpush.msra.mxu0 %v1882
        %1934 = vmatpush.msra.mxu0 %v1881
        %1935 = vmatpush.msra.mxu0 %v1880
        %1936 = vmatpush.msra.mxu0 %v1879
        %1937 = vmatpush.msra.mxu0 %v1878
        %1938 = vmatpush.msra.mxu0 %v1877
        %1939 = vmatpush.msra.mxu0 %v1876
        %1940 = vmatmul.f32.gmra.mxu0 %v1922
        %v1941 = vpop.f32.mrf.mxu0
        %v1942 = vadd.f32 %v1920, %v1941
        %1943 = vdwg.mxu0
        %s1944 = scalar_lea.vmem %s9, 160
        %v1945 = vld [vmem:[%s1944] sm:$0xff]
        %v1946 = vld [vmem:[%s1944 + $0x8] sm:$0xff]
        %v1947 = vld [vmem:[%s1944 + $0x10] sm:$0xff]
        %v1948 = vld [vmem:[%s1944 + $0x18] sm:$0xff]
        %v1949 = vld [vmem:[%s1944 + $0x20] sm:$0xff]
        %v1950 = vld [vmem:[%s1944 + $0x28] sm:$0xff]
        %v1951 = vld [vmem:[%s1944 + $0x30] sm:$0xff]
        %v1952 = vld [vmem:[%s1944 + $0x38] sm:$0xff]
        %v1953 = vld [vmem:[%s1944 + $0x40] sm:$0xff]
        %v1954 = vld [vmem:[%s1944 + $0x48] sm:$0xff]
        %v1955 = vrot.slane %v1875, 2
        %v1956 = vsel %vm1899, %v1955, 0
        %1958 = vmatpush.msra.mxu0 0.0
        %1959 = vmatpush.msra.mxu0 0.0
        %1960 = vmatpush.msra.mxu0 0.0
        %1961 = vmatpush.msra.mxu0 0.0
        %1962 = vmatpush.msra.mxu0 0.0
        %1963 = vmatpush.msra.mxu0 0.0
        %1964 = vmatpush.msra.mxu0 %v1954
        %1965 = vmatpush.msra.mxu0 %v1953
        %1966 = vmatpush.msra.mxu0 %v1952
        %1967 = vmatpush.msra.mxu0 %v1951
        %1968 = vmatpush.msra.mxu0 %v1950
        %1969 = vmatpush.msra.mxu0 %v1949
        %1970 = vmatpush.msra.mxu0 %v1948
        %1971 = vmatpush.msra.mxu0 %v1947
        %1972 = vmatpush.msra.mxu0 %v1946
        %1973 = vmatpush.msra.mxu0 %v1945
        %1974 = vmatmul.f32.gmra.mxu0 %v1956
        %v1975 = vpop.f32.mrf.mxu0
        %v1976 = vadd.f32 0.0, %v1975
        %1977 = vdwg.mxu0
        %v1978 = vadd.f32 %v1942, %v1976
        %s1979 = scalar_lea.vmem %s9, 240
        %v1980 = vld [vmem:[%s1979] sm:$0xff]
        %v1981 = vld [vmem:[%s1979 + $0x8] sm:$0xff]
        %v1982 = vld [vmem:[%s1979 + $0x10] sm:$0xff]
        %v1983 = vld [vmem:[%s1979 + $0x18] sm:$0xff]
        %v1984 = vld [vmem:[%s1979 + $0x20] sm:$0xff]
        %v1985 = vld [vmem:[%s1979 + $0x28] sm:$0xff]
        %v1986 = vld [vmem:[%s1979 + $0x30] sm:$0xff]
        %v1987 = vld [vmem:[%s1979 + $0x38] sm:$0xff]
        %v1988 = vld [vmem:[%s1979 + $0x40] sm:$0xff]
        %v1989 = vld [vmem:[%s1979 + $0x48] sm:$0xff]
        %v1990 = vrot.slane %v1875, 3
        %v1991 = vsel %vm1899, %v1990, 0
        %1993 = vmatpush.msra.mxu0 0.0
        %1994 = vmatpush.msra.mxu0 0.0
        %1995 = vmatpush.msra.mxu0 0.0
        %1996 = vmatpush.msra.mxu0 0.0
        %1997 = vmatpush.msra.mxu0 0.0
        %1998 = vmatpush.msra.mxu0 0.0
        %1999 = vmatpush.msra.mxu0 %v1989
        %2000 = vmatpush.msra.mxu0 %v1988
        %2001 = vmatpush.msra.mxu0 %v1987
        %2002 = vmatpush.msra.mxu0 %v1986
        %2003 = vmatpush.msra.mxu0 %v1985
        %2004 = vmatpush.msra.mxu0 %v1984
        %2005 = vmatpush.msra.mxu0 %v1983
        %2006 = vmatpush.msra.mxu0 %v1982
        %2007 = vmatpush.msra.mxu0 %v1981
        %2008 = vmatpush.msra.mxu0 %v1980
        %2009 = vmatmul.f32.gmra.mxu0 %v1991
        %v2010 = vpop.f32.mrf.mxu0
        %v2011 = vadd.f32 0.0, %v2010
        %2012 = vdwg.mxu0
        %v2013 = vadd.f32 %v1978, %v2011
        %s2014 = scalar_lea.vmem %s9, 320
        %v2015 = vld [vmem:[%s2014] sm:$0xff]
        %v2016 = vld [vmem:[%s2014 + $0x8] sm:$0xff]
        %v2017 = vld [vmem:[%s2014 + $0x10] sm:$0xff]
        %v2018 = vld [vmem:[%s2014 + $0x18] sm:$0xff]
        %v2019 = vld [vmem:[%s2014 + $0x20] sm:$0xff]
        %v2020 = vld [vmem:[%s2014 + $0x28] sm:$0xff]
        %v2021 = vld [vmem:[%s2014 + $0x30] sm:$0xff]
        %v2022 = vld [vmem:[%s2014 + $0x38] sm:$0xff]
        %v2023 = vld [vmem:[%s2014 + $0x40] sm:$0xff]
        %v2024 = vld [vmem:[%s2014 + $0x48] sm:$0xff]
        %v2025 = vrot.slane %v1875, 4
        %v2026 = vsel %vm1899, %v2025, 0
        %2028 = vmatpush.msra.mxu0 0.0
        %2029 = vmatpush.msra.mxu0 0.0
        %2030 = vmatpush.msra.mxu0 0.0
        %2031 = vmatpush.msra.mxu0 0.0
        %2032 = vmatpush.msra.mxu0 0.0
        %2033 = vmatpush.msra.mxu0 0.0
        %2034 = vmatpush.msra.mxu0 %v2024
        %2035 = vmatpush.msra.mxu0 %v2023
        %2036 = vmatpush.msra.mxu0 %v2022
        %2037 = vmatpush.msra.mxu0 %v2021
        %2038 = vmatpush.msra.mxu0 %v2020
        %2039 = vmatpush.msra.mxu0 %v2019
        %2040 = vmatpush.msra.mxu0 %v2018
        %2041 = vmatpush.msra.mxu0 %v2017
        %2042 = vmatpush.msra.mxu0 %v2016
        %2043 = vmatpush.msra.mxu0 %v2015
        %2044 = vmatmul.f32.gmra.mxu0 %v2026
        %v2045 = vpop.f32.mrf.mxu0
        %v2046 = vadd.f32 0.0, %v2045
        %2047 = vdwg.mxu0
        %v2048 = vadd.f32 %v2013, %v2046
        %v2049 = vld [vmem:[%s10] sm:$0x1]
        %v2050 = vadd.f32 %v2048, %v2049
        %v2051 = vmax.f32 %v2050, 0.0
        %v2052 = vld [vmem:[%s11] sm:$0xff]
        %v2053 = vld [vmem:[%s11 + $0x8] sm:$0xff]
        %v2054 = vld [vmem:[%s11 + $0x10] sm:$0xff]
        %v2055 = vld [vmem:[%s11 + $0x18] sm:$0xff]
        %v2056 = vld [vmem:[%s11 + $0x20] sm:$0xff]
        %v2057 = vld [vmem:[%s11 + $0x28] sm:$0xff]
        %v2058 = vld [vmem:[%s11 + $0x30] sm:$0xff]
        %v2059 = vld [vmem:[%s11 + $0x38] sm:$0xff]
        %v2060 = vld [vmem:[%s11 + $0x40] sm:$0xff]
        %v2061 = vld [vmem:[%s11 + $0x48] sm:$0xff]
        %v2062 = vld [vmem:[%s11 + $0x50] sm:$0xff]
        %v2063 = vld [vmem:[%s11 + $0x58] sm:$0xff]
        %v2064 = vld [vmem:[%s11 + $0x60] sm:$0xff]
        %v2065 = vld [vmem:[%s11 + $0x68] sm:$0xff]
        %v2066 = vld [vmem:[%s11 + $0x70] sm:$0xff]
        %v2067 = vld [vmem:[%s11 + $0x78] sm:$0xff]
        %v2068 = vld [vmem:[%s12] sm:$0x1]
        %2069 = vmatpush.msra.mxu0 %v2067
        %2070 = vmatpush.msra.mxu0 %v2066
        %2071 = vmatpush.msra.mxu0 %v2065
        %2072 = vmatpush.msra.mxu0 %v2064
        %2073 = vmatpush.msra.mxu0 %v2063
        %2074 = vmatpush.msra.mxu0 %v2062
        %2075 = vmatpush.msra.mxu0 %v2061
        %2076 = vmatpush.msra.mxu0 %v2060
        %2077 = vmatpush.msra.mxu0 %v2059
        %2078 = vmatpush.msra.mxu0 %v2058
        %2079 = vmatpush.msra.mxu0 %v2057
        %2080 = vmatpush.msra.mxu0 %v2056
        %2081 = vmatpush.msra.mxu0 %v2055
        %2082 = vmatpush.msra.mxu0 %v2054
        %2083 = vmatpush.msra.mxu0 %v2053
        %2084 = vmatpush.msra.mxu0 %v2052
        %2085 = vmatmul.f32.gmra.mxu0 %v2051
        %v2086 = vpop.f32.mrf.mxu0
        %v2087 = vadd.f32 %v2068, %v2086
        %2088 = vdwg.mxu0
        %v2089 = vmax.f32 %v2087, 0.0
        %v2090 = vld [vmem:[%s13] sm:$0xff]
        %v2091 = vld [vmem:[%s13 + $0x8] sm:$0xff]
        %v2092 = vld [vmem:[%s13 + $0x10] sm:$0xff]
        %v2093 = vld [vmem:[%s13 + $0x18] sm:$0xff]
        %v2094 = vld [vmem:[%s13 + $0x20] sm:$0xff]
        %v2095 = vld [vmem:[%s13 + $0x28] sm:$0xff]
        %v2096 = vld [vmem:[%s13 + $0x30] sm:$0xff]
        %v2097 = vld [vmem:[%s13 + $0x38] sm:$0xff]
        %v2098 = vld [vmem:[%s13 + $0x40] sm:$0xff]
        %v2099 = vld [vmem:[%s13 + $0x48] sm:$0xff]
        %v2100 = vld [vmem:[%s13 + $0x50] sm:$0xff]
        %v2101 = vld [vmem:[%s13 + $0x58] sm:$0xff]
        %v2102 = vld [vmem:[%s13 + $0x60] sm:$0xff]
        %v2103 = vld [vmem:[%s13 + $0x68] sm:$0xff]
        %v2104 = vld [vmem:[%s13 + $0x70] sm:$0xff]
        %v2105 = vld [vmem:[%s13 + $0x78] sm:$0xff]
        %v2106 = vld [vmem:[%s14] sm:$0x1]
        %2107 = vmatpush.msra.mxu0 %v2105
        %2108 = vmatpush.msra.mxu0 %v2104
        %2109 = vmatpush.msra.mxu0 %v2103
        %2110 = vmatpush.msra.mxu0 %v2102
        %2111 = vmatpush.msra.mxu0 %v2101
        %2112 = vmatpush.msra.mxu0 %v2100
        %2113 = vmatpush.msra.mxu0 %v2099
        %2114 = vmatpush.msra.mxu0 %v2098
        %2115 = vmatpush.msra.mxu0 %v2097
        %2116 = vmatpush.msra.mxu0 %v2096
        %2117 = vmatpush.msra.mxu0 %v2095
        %2118 = vmatpush.msra.mxu0 %v2094
        %2119 = vmatpush.msra.mxu0 %v2093
        %2120 = vmatpush.msra.mxu0 %v2092
        %2121 = vmatpush.msra.mxu0 %v2091
        %2122 = vmatpush.msra.mxu0 %v2090
        %2123 = vmatmul.f32.gmra.mxu0 %v2089
        %v2124 = vpop.f32.mrf.mxu0
        %v2125 = vadd.f32 %v2106, %v2124
        %2126 = vdwg.mxu0
        %2127 = vst [vmem:[%s486] sm:$0x1] %v2125
        %s2128 = sand.u32 %s357, 1
        %s2129 = scalar_lea.sflag [#allocation3], %s2128
        %s2130 = sand.u32 %s357, 1
        %s2131 = scalar_lea.vmem [#allocation2], %s2130
        // Predicated region
        $region81: #{net_forward.1} parent=79 // pred_check
          %p2132 = pneg %p367
        $region82: #{net_forward.1} parent=79 // pred_check_branch
          %2134 = sbr.rel (%p2132) target = $region84
        $region83: #{net_forward.1} parent=79 // pred_region
          %2136 = vsyncadd %s2129, 0
          %s2137 = scalar_lea.hbm %s15, %s29
          %s2139 = sshll.u32 %s2131, 4
          %s2140 = int_to_ptr.vmem [resolvable:$true] %s2139
          %s2141 = sshll.u32 %s2137, 4
          %s2142 = int_to_ptr.hbm [resolvable:$true] %s2141
          %2144 = dma.vmem_to_hbm [thread:$0]  %s2140, 16, %s2142, %s2129
        $region84: #{net_forward.1} parent=79 // pred_fallthru
          _
      $region80: #{net_forward.1} parent=5 // pred_fallthru
        _
      %p2145 = scmp.le.s32.totalorder 2, %s24
      // Predicated region
      $region85: #{net_forward.1} parent=5 // pred_check
        %p2146 = pneg %p2145
      $region86: #{net_forward.1} parent=5 // pred_check_branch
        %2148 = sbr.rel (%p2146) target = $region88
      $region87: #{net_forward.1} parent=5 // pred_region
        %s2149 = ssub.s32 %s24, 2
        // Predicated region
        $region89: #{net_forward.1} parent=87 // pred_check
          %p2150 = pneg %p373
        $region90: #{net_forward.1} parent=87 // pred_check_branch
          %2152 = sbr.rel (%p2150) target = $region92
        $region91: #{net_forward.1} parent=87 // pred_region
          %s2153 = sand.u32 %s358, 1
          %s2154 = scalar_lea.sflag [#allocation3], %s2153
          %s2155 = sand.u32 %s358, 1
          %s2156 = scalar_lea.vmem [#allocation2], %s2155
          %2158 = dma.done %s2154, 16
        $region92: #{net_forward.1} parent=87 // pred_fallthru
          _
      $region88: #{net_forward.1} parent=5 // pred_fallthru
        _
    $region6: #{net_forward.1} parent=1 // loop_footer
      %s28 = sadd.s32 1, %s24
    $region7: #{net_forward.1} parent=1 // loop_footer_branch
      %23 = sbr.rel target = $region3
    $region8: #{net_forward.1} parent=1 // loop_exit
      _
    %2159 = vsyncpa [#allocation3], 1
    %s2160 = scalar_lea.sflag [#allocation3], 1
    %2161 = vsyncpa %s2160, 1

</llo_original>
